<compile_context>
chip_gen: v5e
topology: v5e:2x2
jax: 0.10.0
libtpu: 0.0.40
codegen_flags: <defaults>
</compile_context>

<pallas_src>
import math
import jax
import jax.numpy as jnp
from jax import lax
from jax.experimental import pallas as pl
from jax.experimental.pallas import tpu as pltpu


# ----------------------------- fused Pallas kernel --------------------------

def _egcno_fused_kernel(ax_ref, w0_ref, g_ref, uh_ref, b_ref, out_ref):
    """All T timesteps in one invocation.

    Per step:  W <- mat_GRU(W);  out_t = RReLU( (A_hat @ X_tilde_t) @ W ).
    ax_ref : (T, N, C)  precomputed A_hat @ X_tilde_t   (f32)
    w0_ref : (C, C)     initial GCN weight
    g_ref  : (5C, C)    stacked [Wu; Wr; Wh; Uu; Ur]
    uh_ref : (C, C)     Uh
    b_ref  : (3C, C)    stacked [bu; br; bh]
    out_ref: (T, N, C)
    """
    T = ax_ref.shape[0]
    C = w0_ref.shape[0]
    f32 = jnp.float32

    # Hoist invariant loads out of the recurrence (loaded once into vregs/VMEM).
    G = g_ref[...]                                    # (5C, C)
    Uh = uh_ref[...]                                  # (C, C)
    B = b_ref[...]                                    # (3C, C)
    b_ur = B[0:2 * C]                                 # [bu; br]  (2C, C)
    b_h = B[2 * C:3 * C]                              # bh        (C, C)
    slope = jnp.float32((1.0 / 8.0 + 1.0 / 3.0) / 2.0)  # RReLU eval-mode slope

    def step(t, w):
        # ---- mat_GRU_cell on W (z_topk == prev_Q in the reference forward) ----
        q = w                                                       # (C, C) f32
        gq = jnp.dot(G, q, preferred_element_type=f32)              # (5C, C) one MXU push
        # Fused sigmoid over stacked [update; reset]: one EUP pass on a (2C,C) tile.
        ur = jax.nn.sigmoid(gq[0:2 * C] + gq[3 * C:5 * C] + b_ur)
        update = ur[0:C]
        reset = ur[C:2 * C]
        h_cap = jnp.tanh(
            gq[2 * C:3 * C]
            + jnp.dot(Uh, reset * q, preferred_element_type=f32)
            + b_h)
        w_new = (1.0 - update) * q + update * h_cap                 # (C, C)

        # ---- GCN snapshot: (A_hat @ X_tilde_t) @ W, then eval-mode RReLU ----
        h = jnp.dot(ax_ref[t], w_new, preferred_element_type=f32)   # (N, C) f32
        out_ref[t] = jnp.where(h >= 0, h, slope * h)
        return w_new                                                # carry to t+1

    # Short, fixed trip-count recurrence: fully unrolled for LLO visibility;
    # W is carried in registers, never round-tripped through HBM.
    lax.fori_loop(0, T, step, w0_ref[...], unroll=True)


# ----------------------------- wrapper ---------------------------------------

def evolve_gcno_forward(Xs, A_hat, initial_W, pool_P, gru_params):
    """Xs: (T, N, F). Returns final_emb of shape (N, T, C)."""
    T, N, _ = Xs.shape
    C = initial_W.shape[0]
    f32 = jnp.float32

    # Hoisted + reassociated: AX_t = A_hat @ (X_t @ P).  Fully parallel batched
    # matmuls under XLA (both cores / full MXU), outside the serial recurrence.
    # TODO(synk): when X is known time-invariant (one_hot=True), compute a single
    # (N, C) AX and broadcast inside the kernel instead of a (T, N, C) slab.
    AX_all = jnp.einsum("nm,tmf,fc->tnc", A_hat, Xs, pool_P).astype(f32)   # (T, N, C)

    # Stack gate parameters so the GRU needs 2 matmuls instead of 6.
    G = jnp.concatenate([gru_params["Wu"], gru_params["Wr"], gru_params["Wh"],
                         gru_params["Uu"], gru_params["Ur"]], axis=0)       # (5C, C)
    B = jnp.concatenate([gru_params["bu"], gru_params["br"],
                         gru_params["bh"]], axis=0)                         # (3C, C)
    Uh = gru_params["Uh"]

    flops_per_step = 2 * (5 * C * C * C + C * C * C + N * C * C) + 12 * C * C + 4 * N * C
    cost = pl.CostEstimate(
        flops=int(T * flops_per_step),
        transcendentals=int(T * 3 * C * C),
        bytes_accessed=int(4 * (2 * T * N * C + 10 * C * C)),
    )

    out_tnc = pl.pallas_call(
        _egcno_fused_kernel,
        out_shape=jax.ShapeDtypeStruct((T, N, C), f32),
        # Single invocation: everything resides in VMEM once (tiny footprint);
        # no grid, no per-step pipeline bookkeeping.
        in_specs=[
            pl.BlockSpec(memory_space=pltpu.MemorySpace.VMEM),   # AX_all (T,N,C)
            pl.BlockSpec(memory_space=pltpu.MemorySpace.VMEM),   # initial W
            pl.BlockSpec(memory_space=pltpu.MemorySpace.VMEM),   # stacked gates
            pl.BlockSpec(memory_space=pltpu.MemorySpace.VMEM),   # Uh
            pl.BlockSpec(memory_space=pltpu.MemorySpace.VMEM),   # stacked biases
        ],
        out_specs=pl.BlockSpec(memory_space=pltpu.MemorySpace.VMEM),
        cost_estimate=cost,
    )(AX_all, initial_W, G, Uh, B)

    return jnp.transpose(out_tnc, (1, 0, 2))                     # (N, T, C)


# ----------------------------- pure-JAX reference ----------------------------

def _reference_forward(Xs, A_hat, initial_W, pool_P, gru):
    T = Xs.shape[0]
    W = initial_W
    outs = []
    slope = (1.0 / 8.0 + 1.0 / 3.0) / 2.0
    for t in range(T):
        q = W
        update = jax.nn.sigmoid(gru["Wu"] @ q + gru["Uu"] @ q + gru["bu"])
        reset = jax.nn.sigmoid(gru["Wr"] @ q + gru["Ur"] @ q + gru["br"])
        h_cap = jnp.tanh(gru["Wh"] @ q + gru["Uh"] @ (reset * q) + gru["bh"])
        W = (1.0 - update) * q + update * h_cap
        x_tilde = Xs[t] @ pool_P
        h = A_hat @ (x_tilde @ W)
        outs.append(jnp.where(h >= 0, h, slope * h))
    return jnp.stack(outs, axis=1)                                # (N, T, C)


# ----------------------------- param init ------------------------------------

def _uniform(key, shape, stdv):
    return jax.random.uniform(key, shape, dtype=jnp.float32, minval=-stdv, maxval=stdv)


def init_params(key, num_nodes, in_channels):
    C = in_channels
    keys = jax.random.split(key, 10)

    # initial_weight (C, C), stdv = 1/sqrt(C)  [reset_param uses size(1)]
    initial_W = _uniform(keys[0], (C, C), 1.0 / math.sqrt(C))

    # pool_layer: nn.Linear(num_nodes, C, bias=False); weight (C, num_nodes),
    # default init U(-1/sqrt(fan_in), 1/sqrt(fan_in)). Pass transposed as P.
    pool_w = _uniform(keys[1], (C, num_nodes), 1.0 / math.sqrt(num_nodes))
    pool_P = pool_w.T                                              # (num_nodes, C)

    # mat_GRU_gate params: W, U (C,C) uniform(+-1/sqrt(C)), bias zeros (C,C)
    stdv = 1.0 / math.sqrt(C)
    gru = {
        "Wu": _uniform(keys[2], (C, C), stdv), "Uu": _uniform(keys[3], (C, C), stdv),
        "bu": jnp.zeros((C, C), jnp.float32),
        "Wr": _uniform(keys[4], (C, C), stdv), "Ur": _uniform(keys[5], (C, C), stdv),
        "br": jnp.zeros((C, C), jnp.float32),
        "Wh": _uniform(keys[6], (C, C), stdv), "Uh": _uniform(keys[7], (C, C), stdv),
        "bh": jnp.zeros((C, C), jnp.float32),
    }
    return initial_W, pool_P, gru


def build_norm_adj(key, num_nodes):
    """Random undirected graph -> D^-1/2 (A + I) D^-1/2 (dense)."""
    logits = jax.random.uniform(key, (num_nodes, num_nodes))
    A = (logits > 0.7).astype(jnp.float32)
    A = jnp.maximum(A, A.T)                                        # to_undirected
    A = A * (1.0 - jnp.eye(num_nodes, dtype=jnp.float32))          # drop self loops
    A = A + jnp.eye(num_nodes, dtype=jnp.float32)                  # add_self_loops
    deg = jnp.sum(A, axis=1)
    d_inv_sqrt = 1.0 / jnp.sqrt(deg)
    return A * d_inv_sqrt[:, None] * d_inv_sqrt[None, :]


# ----------------------------- main -------------------------------------------

if __name__ == "__main__":
    num_nodes = 16
    in_channels = 32
    T = 4

    key = jax.random.PRNGKey(0)
    k_par, k_adj = jax.random.split(key)

    initial_W, pool_P, gru_params = init_params(k_par, num_nodes, in_channels)
    A_hat = build_norm_adj(k_adj, num_nodes)

    # one_hot=True: node features are one-hot node ids, identical each snapshot
    X_onehot = jnp.eye(num_nodes, dtype=jnp.float32)
    Xs = jnp.broadcast_to(X_onehot, (T, num_nodes, num_nodes))

    fwd = jax.jit(evolve_gcno_forward)
    final_emb = jax.block_until_ready(fwd(Xs, A_hat, initial_W, pool_P, gru_params))

    assert final_emb.shape == (num_nodes, T, in_channels)
    assert bool(jnp.all(jnp.isfinite(final_emb)))

    # Check against pure-JAX reference. Kernel math is all f32 now; only the
    # (A @ XP) @ W reassociation differs, so the tolerance can be tight.
    ref = _reference_forward(Xs, A_hat, initial_W, pool_P, gru_params)
    max_err = float(jnp.max(jnp.abs(final_emb - ref)))
    assert max_err < 1e-3, f"max abs error vs reference: {max_err}"

    print("KERNEL_OK")
</pallas_src>

<mosaic_0001>
module attributes {stable_mosaic.version = 11 : i64} {
  func.func @_egcno_fused_kernel(%arg0: memref<4x16x32xf32, #tpu.memory_space<vmem>>, %arg1: memref<32x32xf32, #tpu.memory_space<vmem>>, %arg2: memref<160x32xf32, #tpu.memory_space<vmem>>, %arg3: memref<32x32xf32, #tpu.memory_space<vmem>>, %arg4: memref<96x32xf32, #tpu.memory_space<vmem>>, %arg5: memref<4x16x32xf32, #tpu.memory_space<vmem>>) attributes {dimension_semantics = [], scalar_prefetch = 0 : i64, scratch_operands = 0 : i64, tpu.core_type = #tpu.core_type<tc>} {
    %c0 = arith.constant 0 : index
    %c0_0 = arith.constant 0 : index
    %0 = vector.load %arg2[%c0, %c0_0] : memref<160x32xf32, #tpu.memory_space<vmem>>, vector<160x32xf32>
    %c0_1 = arith.constant 0 : index
    %c0_2 = arith.constant 0 : index
    %1 = vector.load %arg3[%c0_1, %c0_2] : memref<32x32xf32, #tpu.memory_space<vmem>>, vector<32x32xf32>
    %c0_3 = arith.constant 0 : index
    %c0_4 = arith.constant 0 : index
    %2 = vector.load %arg4[%c0_3, %c0_4] : memref<96x32xf32, #tpu.memory_space<vmem>>, vector<96x32xf32>
    %3 = vector.extract_strided_slice %2 {offsets = [0, 0], sizes = [64, 32], strides = [1, 1]} : vector<96x32xf32> to vector<64x32xf32>
    %4 = vector.extract_strided_slice %2 {offsets = [64, 0], sizes = [32, 32], strides = [1, 1]} : vector<96x32xf32> to vector<32x32xf32>
    %c0_5 = arith.constant 0 : index
    %c0_6 = arith.constant 0 : index
    %5 = vector.load %arg1[%c0_5, %c0_6] : memref<32x32xf32, #tpu.memory_space<vmem>>, vector<32x32xf32>
    %cst = arith.constant 0.229166672 : f32
    %c0_i32 = arith.constant 0 : i32
    %cst_7 = arith.constant dense<0.000000e+00> : vector<160x32xf32>
    %6 = tpu.matmul %0, %5, %cst_7 {dimension_numbers = #tpu.dot_dimension_numbers<[1], [0], [0], [1], [0, 0, 1, 1], [], []>} : vector<160x32xf32>, vector<32x32xf32>, vector<160x32xf32> -> vector<160x32xf32>
    %7 = vector.extract_strided_slice %6 {offsets = [0, 0], sizes = [64, 32], strides = [1, 1]} : vector<160x32xf32> to vector<64x32xf32>
    %8 = vector.extract_strided_slice %6 {offsets = [96, 0], sizes = [64, 32], strides = [1, 1]} : vector<160x32xf32> to vector<64x32xf32>
    %9 = arith.addf %7, %8 : vector<64x32xf32>
    %10 = arith.addf %9, %3 : vector<64x32xf32>
    %11 = arith.negf %10 : vector<64x32xf32>
    %12 = math.exp %11 : vector<64x32xf32>
    %cst_8 = arith.constant 1.000000e+00 : f32
    %13 = vector.broadcast %cst_8 : f32 to vector<64x32xf32>
    %14 = arith.addf %13, %12 : vector<64x32xf32>
    %15 = arith.divf %13, %14 : vector<64x32xf32>
    %16 = vector.extract_strided_slice %15 {offsets = [0, 0], sizes = [32, 32], strides = [1, 1]} : vector<64x32xf32> to vector<32x32xf32>
    %17 = vector.extract_strided_slice %15 {offsets = [32, 0], sizes = [32, 32], strides = [1, 1]} : vector<64x32xf32> to vector<32x32xf32>
    %18 = vector.extract_strided_slice %6 {offsets = [64, 0], sizes = [32, 32], strides = [1, 1]} : vector<160x32xf32> to vector<32x32xf32>
    %19 = arith.mulf %17, %5 : vector<32x32xf32>
    %cst_9 = arith.constant dense<0.000000e+00> : vector<32x32xf32>
    %20 = tpu.matmul %1, %19, %cst_9 {dimension_numbers = #tpu.dot_dimension_numbers<[1], [0], [0], [1], [0, 0, 1, 1], [], []>} : vector<32x32xf32>, vector<32x32xf32>, vector<32x32xf32> -> vector<32x32xf32>
    %21 = arith.addf %18, %20 : vector<32x32xf32>
    %22 = arith.addf %21, %4 : vector<32x32xf32>
    %23 = math.tanh %22 : vector<32x32xf32>
    %cst_10 = arith.constant 1.000000e+00 : f32
    %24 = vector.broadcast %cst_10 : f32 to vector<32x32xf32>
    %25 = arith.subf %24, %16 : vector<32x32xf32>
    %26 = arith.mulf %25, %5 : vector<32x32xf32>
    %27 = arith.mulf %16, %23 : vector<32x32xf32>
    %28 = arith.addf %26, %27 : vector<32x32xf32>
    %29 = arith.index_cast %c0_i32 : i32 to index
    %c0_11 = arith.constant 0 : index
    %c0_12 = arith.constant 0 : index
    %30 = vector.load %arg0[%29, %c0_11, %c0_12] : memref<4x16x32xf32, #tpu.memory_space<vmem>>, vector<1x16x32xf32>
    %31 = vector.shape_cast %30 : vector<1x16x32xf32> to vector<16x32xf32>
    %cst_13 = arith.constant dense<0.000000e+00> : vector<16x32xf32>
    %32 = tpu.matmul %31, %28, %cst_13 {dimension_numbers = #tpu.dot_dimension_numbers<[1], [0], [0], [1], [0, 0, 1, 1], [], []>} : vector<16x32xf32>, vector<32x32xf32>, vector<16x32xf32> -> vector<16x32xf32>
    %cst_14 = arith.constant 0.000000e+00 : f32
    %33 = vector.broadcast %cst_14 : f32 to vector<16x32xf32>
    %34 = arith.cmpf oge, %32, %33 : vector<16x32xf32>
    %35 = vector.broadcast %cst : f32 to vector<16x32xf32>
    %36 = arith.mulf %35, %32 : vector<16x32xf32>
    %37 = arith.select %34, %32, %36 : vector<16x32xi1>, vector<16x32xf32>
    %38 = arith.index_cast %c0_i32 : i32 to index
    %c0_15 = arith.constant 0 : index
    %c0_16 = arith.constant 0 : index
    %39 = vector.load %arg5[%38, %c0_15, %c0_16] : memref<4x16x32xf32, #tpu.memory_space<vmem>>, vector<1x16x32xf32>
    %40 = vector.shape_cast %39 : vector<1x16x32xf32> to vector<16x32xf32>
    %41 = vector.shape_cast %37 : vector<16x32xf32> to vector<1x16x32xf32>
    tpu.vector_store %arg5[%38, %c0_15, %c0_16], %41 {strides = array<i32>} : memref<4x16x32xf32, #tpu.memory_space<vmem>>, vector<1x16x32xf32>,
    %c1_i32 = arith.constant 1 : i32
    %cst_17 = arith.constant dense<0.000000e+00> : vector<160x32xf32>
    %42 = tpu.matmul %0, %28, %cst_17 {dimension_numbers = #tpu.dot_dimension_numbers<[1], [0], [0], [1], [0, 0, 1, 1], [], []>} : vector<160x32xf32>, vector<32x32xf32>, vector<160x32xf32> -> vector<160x32xf32>
    %43 = vector.extract_strided_slice %42 {offsets = [0, 0], sizes = [64, 32], strides = [1, 1]} : vector<160x32xf32> to vector<64x32xf32>
    %44 = vector.extract_strided_slice %42 {offsets = [96, 0], sizes = [64, 32], strides = [1, 1]} : vector<160x32xf32> to vector<64x32xf32>
    %45 = arith.addf %43, %44 : vector<64x32xf32>
    %46 = arith.addf %45, %3 : vector<64x32xf32>
    %47 = arith.negf %46 : vector<64x32xf32>
    %48 = math.exp %47 : vector<64x32xf32>
    %cst_18 = arith.constant 1.000000e+00 : f32
    %49 = vector.broadcast %cst_18 : f32 to vector<64x32xf32>
    %50 = arith.addf %49, %48 : vector<64x32xf32>
    %51 = arith.divf %49, %50 : vector<64x32xf32>
    %52 = vector.extract_strided_slice %51 {offsets = [0, 0], sizes = [32, 32], strides = [1, 1]} : vector<64x32xf32> to vector<32x32xf32>
    %53 = vector.extract_strided_slice %51 {offsets = [32, 0], sizes = [32, 32], strides = [1, 1]} : vector<64x32xf32> to vector<32x32xf32>
    %54 = vector.extract_strided_slice %42 {offsets = [64, 0], sizes = [32, 32], strides = [1, 1]} : vector<160x32xf32> to vector<32x32xf32>
    %55 = arith.mulf %53, %28 : vector<32x32xf32>
    %cst_19 = arith.constant dense<0.000000e+00> : vector<32x32xf32>
    %56 = tpu.matmul %1, %55, %cst_19 {dimension_numbers = #tpu.dot_dimension_numbers<[1], [0], [0], [1], [0, 0, 1, 1], [], []>} : vector<32x32xf32>, vector<32x32xf32>, vector<32x32xf32> -> vector<32x32xf32>
    %57 = arith.addf %54, %56 : vector<32x32xf32>
    %58 = arith.addf %57, %4 : vector<32x32xf32>
    %59 = math.tanh %58 : vector<32x32xf32>
    %cst_20 = arith.constant 1.000000e+00 : f32
    %60 = vector.broadcast %cst_20 : f32 to vector<32x32xf32>
    %61 = arith.subf %60, %52 : vector<32x32xf32>
    %62 = arith.mulf %61, %28 : vector<32x32xf32>
    %63 = arith.mulf %52, %59 : vector<32x32xf32>
    %64 = arith.addf %62, %63 : vector<32x32xf32>
    %65 = arith.index_cast %c1_i32 : i32 to index
    %c0_21 = arith.constant 0 : index
    %c0_22 = arith.constant 0 : index
    %66 = vector.load %arg0[%65, %c0_21, %c0_22] : memref<4x16x32xf32, #tpu.memory_space<vmem>>, vector<1x16x32xf32>
    %67 = vector.shape_cast %66 : vector<1x16x32xf32> to vector<16x32xf32>
    %cst_23 = arith.constant dense<0.000000e+00> : vector<16x32xf32>
    %68 = tpu.matmul %67, %64, %cst_23 {dimension_numbers = #tpu.dot_dimension_numbers<[1], [0], [0], [1], [0, 0, 1, 1], [], []>} : vector<16x32xf32>, vector<32x32xf32>, vector<16x32xf32> -> vector<16x32xf32>
    %cst_24 = arith.constant 0.000000e+00 : f32
    %69 = vector.broadcast %cst_24 : f32 to vector<16x32xf32>
    %70 = arith.cmpf oge, %68, %69 : vector<16x32xf32>
    %71 = vector.broadcast %cst : f32 to vector<16x32xf32>
    %72 = arith.mulf %71, %68 : vector<16x32xf32>
    %73 = arith.select %70, %68, %72 : vector<16x32xi1>, vector<16x32xf32>
    %74 = arith.index_cast %c1_i32 : i32 to index
    %c0_25 = arith.constant 0 : index
    %c0_26 = arith.constant 0 : index
    %75 = vector.load %arg5[%74, %c0_25, %c0_26] : memref<4x16x32xf32, #tpu.memory_space<vmem>>, vector<1x16x32xf32>
    %76 = vector.shape_cast %75 : vector<1x16x32xf32> to vector<16x32xf32>
    %77 = vector.shape_cast %73 : vector<16x32xf32> to vector<1x16x32xf32>
    tpu.vector_store %arg5[%74, %c0_25, %c0_26], %77 {strides = array<i32>} : memref<4x16x32xf32, #tpu.memory_space<vmem>>, vector<1x16x32xf32>,
    %c2_i32 = arith.constant 2 : i32
    %cst_27 = arith.constant dense<0.000000e+00> : vector<160x32xf32>
    %78 = tpu.matmul %0, %64, %cst_27 {dimension_numbers = #tpu.dot_dimension_numbers<[1], [0], [0], [1], [0, 0, 1, 1], [], []>} : vector<160x32xf32>, vector<32x32xf32>, vector<160x32xf32> -> vector<160x32xf32>
    %79 = vector.extract_strided_slice %78 {offsets = [0, 0], sizes = [64, 32], strides = [1, 1]} : vector<160x32xf32> to vector<64x32xf32>
    %80 = vector.extract_strided_slice %78 {offsets = [96, 0], sizes = [64, 32], strides = [1, 1]} : vector<160x32xf32> to vector<64x32xf32>
    %81 = arith.addf %79, %80 : vector<64x32xf32>
    %82 = arith.addf %81, %3 : vector<64x32xf32>
    %83 = arith.negf %82 : vector<64x32xf32>
    %84 = math.exp %83 : vector<64x32xf32>
    %cst_28 = arith.constant 1.000000e+00 : f32
    %85 = vector.broadcast %cst_28 : f32 to vector<64x32xf32>
    %86 = arith.addf %85, %84 : vector<64x32xf32>
    %87 = arith.divf %85, %86 : vector<64x32xf32>
    %88 = vector.extract_strided_slice %87 {offsets = [0, 0], sizes = [32, 32], strides = [1, 1]} : vector<64x32xf32> to vector<32x32xf32>
    %89 = vector.extract_strided_slice %87 {offsets = [32, 0], sizes = [32, 32], strides = [1, 1]} : vector<64x32xf32> to vector<32x32xf32>
    %90 = vector.extract_strided_slice %78 {offsets = [64, 0], sizes = [32, 32], strides = [1, 1]} : vector<160x32xf32> to vector<32x32xf32>
    %91 = arith.mulf %89, %64 : vector<32x32xf32>
    %cst_29 = arith.constant dense<0.000000e+00> : vector<32x32xf32>
    %92 = tpu.matmul %1, %91, %cst_29 {dimension_numbers = #tpu.dot_dimension_numbers<[1], [0], [0], [1], [0, 0, 1, 1], [], []>} : vector<32x32xf32>, vector<32x32xf32>, vector<32x32xf32> -> vector<32x32xf32>
    %93 = arith.addf %90, %92 : vector<32x32xf32>
    %94 = arith.addf %93, %4 : vector<32x32xf32>
    %95 = math.tanh %94 : vector<32x32xf32>
    %cst_30 = arith.constant 1.000000e+00 : f32
    %96 = vector.broadcast %cst_30 : f32 to vector<32x32xf32>
    %97 = arith.subf %96, %88 : vector<32x32xf32>
    %98 = arith.mulf %97, %64 : vector<32x32xf32>
    %99 = arith.mulf %88, %95 : vector<32x32xf32>
    %100 = arith.addf %98, %99 : vector<32x32xf32>
    %101 = arith.index_cast %c2_i32 : i32 to index
    %c0_31 = arith.constant 0 : index
    %c0_32 = arith.constant 0 : index
    %102 = vector.load %arg0[%101, %c0_31, %c0_32] : memref<4x16x32xf32, #tpu.memory_space<vmem>>, vector<1x16x32xf32>
    %103 = vector.shape_cast %102 : vector<1x16x32xf32> to vector<16x32xf32>
    %cst_33 = arith.constant dense<0.000000e+00> : vector<16x32xf32>
    %104 = tpu.matmul %103, %100, %cst_33 {dimension_numbers = #tpu.dot_dimension_numbers<[1], [0], [0], [1], [0, 0, 1, 1], [], []>} : vector<16x32xf32>, vector<32x32xf32>, vector<16x32xf32> -> vector<16x32xf32>
    %cst_34 = arith.constant 0.000000e+00 : f32
    %105 = vector.broadcast %cst_34 : f32 to vector<16x32xf32>
    %106 = arith.cmpf oge, %104, %105 : vector<16x32xf32>
    %107 = vector.broadcast %cst : f32 to vector<16x32xf32>
    %108 = arith.mulf %107, %104 : vector<16x32xf32>
    %109 = arith.select %106, %104, %108 : vector<16x32xi1>, vector<16x32xf32>
    %110 = arith.index_cast %c2_i32 : i32 to index
    %c0_35 = arith.constant 0 : index
    %c0_36 = arith.constant 0 : index
    %111 = vector.load %arg5[%110, %c0_35, %c0_36] : memref<4x16x32xf32, #tpu.memory_space<vmem>>, vector<1x16x32xf32>
    %112 = vector.shape_cast %111 : vector<1x16x32xf32> to vector<16x32xf32>
    %113 = vector.shape_cast %109 : vector<16x32xf32> to vector<1x16x32xf32>
    tpu.vector_store %arg5[%110, %c0_35, %c0_36], %113 {strides = array<i32>} : memref<4x16x32xf32, #tpu.memory_space<vmem>>, vector<1x16x32xf32>,
    %c3_i32 = arith.constant 3 : i32
    %cst_37 = arith.constant dense<0.000000e+00> : vector<160x32xf32>
    %114 = tpu.matmul %0, %100, %cst_37 {dimension_numbers = #tpu.dot_dimension_numbers<[1], [0], [0], [1], [0, 0, 1, 1], [], []>} : vector<160x32xf32>, vector<32x32xf32>, vector<160x32xf32> -> vector<160x32xf32>
    %115 = vector.extract_strided_slice %114 {offsets = [0, 0], sizes = [64, 32], strides = [1, 1]} : vector<160x32xf32> to vector<64x32xf32>
    %116 = vector.extract_strided_slice %114 {offsets = [96, 0], sizes = [64, 32], strides = [1, 1]} : vector<160x32xf32> to vector<64x32xf32>
    %117 = arith.addf %115, %116 : vector<64x32xf32>
    %118 = arith.addf %117, %3 : vector<64x32xf32>
    %119 = arith.negf %118 : vector<64x32xf32>
    %120 = math.exp %119 : vector<64x32xf32>
    %cst_38 = arith.constant 1.000000e+00 : f32
    %121 = vector.broadcast %cst_38 : f32 to vector<64x32xf32>
    %122 = arith.addf %121, %120 : vector<64x32xf32>
    %123 = arith.divf %121, %122 : vector<64x32xf32>
    %124 = vector.extract_strided_slice %123 {offsets = [0, 0], sizes = [32, 32], strides = [1, 1]} : vector<64x32xf32> to vector<32x32xf32>
    %125 = vector.extract_strided_slice %123 {offsets = [32, 0], sizes = [32, 32], strides = [1, 1]} : vector<64x32xf32> to vector<32x32xf32>
    %126 = vector.extract_strided_slice %114 {offsets = [64, 0], sizes = [32, 32], strides = [1, 1]} : vector<160x32xf32> to vector<32x32xf32>
    %127 = arith.mulf %125, %100 : vector<32x32xf32>
    %cst_39 = arith.constant dense<0.000000e+00> : vector<32x32xf32>
    %128 = tpu.matmul %1, %127, %cst_39 {dimension_numbers = #tpu.dot_dimension_numbers<[1], [0], [0], [1], [0, 0, 1, 1], [], []>} : vector<32x32xf32>, vector<32x32xf32>, vector<32x32xf32> -> vector<32x32xf32>
    %129 = arith.addf %126, %128 : vector<32x32xf32>
    %130 = arith.addf %129, %4 : vector<32x32xf32>
    %131 = math.tanh %130 : vector<32x32xf32>
    %cst_40 = arith.constant 1.000000e+00 : f32
    %132 = vector.broadcast %cst_40 : f32 to vector<32x32xf32>
    %133 = arith.subf %132, %124 : vector<32x32xf32>
    %134 = arith.mulf %133, %100 : vector<32x32xf32>
    %135 = arith.mulf %124, %131 : vector<32x32xf32>
    %136 = arith.addf %134, %135 : vector<32x32xf32>
    %137 = arith.index_cast %c3_i32 : i32 to index
    %c0_41 = arith.constant 0 : index
    %c0_42 = arith.constant 0 : index
    %138 = vector.load %arg0[%137, %c0_41, %c0_42] : memref<4x16x32xf32, #tpu.memory_space<vmem>>, vector<1x16x32xf32>
    %139 = vector.shape_cast %138 : vector<1x16x32xf32> to vector<16x32xf32>
    %cst_43 = arith.constant dense<0.000000e+00> : vector<16x32xf32>
    %140 = tpu.matmul %139, %136, %cst_43 {dimension_numbers = #tpu.dot_dimension_numbers<[1], [0], [0], [1], [0, 0, 1, 1], [], []>} : vector<16x32xf32>, vector<32x32xf32>, vector<16x32xf32> -> vector<16x32xf32>
    %cst_44 = arith.constant 0.000000e+00 : f32
    %141 = vector.broadcast %cst_44 : f32 to vector<16x32xf32>
    %142 = arith.cmpf oge, %140, %141 : vector<16x32xf32>
    %143 = vector.broadcast %cst : f32 to vector<16x32xf32>
    %144 = arith.mulf %143, %140 : vector<16x32xf32>
    %145 = arith.select %142, %140, %144 : vector<16x32xi1>, vector<16x32xf32>
    %146 = arith.index_cast %c3_i32 : i32 to index
    %c0_45 = arith.constant 0 : index
    %c0_46 = arith.constant 0 : index
    %147 = vector.load %arg5[%146, %c0_45, %c0_46] : memref<4x16x32xf32, #tpu.memory_space<vmem>>, vector<1x16x32xf32>
    %148 = vector.shape_cast %147 : vector<1x16x32xf32> to vector<16x32xf32>
    %149 = vector.shape_cast %145 : vector<16x32xf32> to vector<1x16x32xf32>
    tpu.vector_store %arg5[%146, %c0_45, %c0_46], %149 {strides = array<i32>} : memref<4x16x32xf32, #tpu.memory_space<vmem>>, vector<1x16x32xf32>,
    %c4_i32 = arith.constant 4 : i32
    return
  }
}

</mosaic_0001>

<llo_original>
// kernel: evolve_gcno_forward.1
$region0: #{evolve_gcno_forward.1}
  #allocation0 [shape = 'u32[]', space=smem, size = 0x4, offset = 0x4, fixed_abs, tag = 'smem constant byte address 0x4 - core index']
  #allocation1 [shape = 'u32[72,128]{1,0:T(1,128)}', space=vmem, size = 0x9000, scoped, tag = 'internal scratch']
  %s0 = inlined_call_operand.vmem [shape: f32[4,16,32], index: 0, kind: input, shape index: {}]
  %s1 = inlined_call_operand.vmem [shape: f32[32,32], index: 1, kind: input, shape index: {}]
  %s2 = inlined_call_operand.vmem [shape: f32[160,32], index: 2, kind: input, shape index: {}]
  %s3 = inlined_call_operand.vmem [shape: f32[32,32], index: 3, kind: input, shape index: {}]
  %s4 = inlined_call_operand.vmem [shape: f32[96,32], index: 4, kind: input, shape index: {}]
  %s5 = inlined_call_operand.vmem [shape: f32[4,16,32], index: 5, kind: output, shape index: {}]
  %s6 = sld [smem:[#allocation0]]
  $region30: #{evolve_gcno_forward.1} parent=0
    _
  %s8 = ssub.s32 1, %s6
  %s9 = scalar_select 0, %s8, %s6
  // Predicated region
  $region2: #{evolve_gcno_forward.1} parent=0 // pred_check
    _
  $region3: #{evolve_gcno_forward.1} parent=0 // pred_check_branch
    %11 = sbr.rel (0) target = $region5
  $region4: #{evolve_gcno_forward.1} parent=0 // pred_region
    _
  $region5: #{evolve_gcno_forward.1} parent=0 // pred_fallthru
    _
  // Predicated region
  $region6: #{evolve_gcno_forward.1} parent=0 // pred_check
    _
  $region7: #{evolve_gcno_forward.1} parent=0 // pred_check_branch
    %13 = sbr.rel (0) target = $region9
  $region8: #{evolve_gcno_forward.1} parent=0 // pred_region
    _
  $region9: #{evolve_gcno_forward.1} parent=0 // pred_fallthru
    _
  // Predicated region
  $region10: #{evolve_gcno_forward.1} parent=0 // pred_check
    _
  $region11: #{evolve_gcno_forward.1} parent=0 // pred_check_branch
    %15 = sbr.rel (0) target = $region13
  $region12: #{evolve_gcno_forward.1} parent=0 // pred_region
    _
  $region13: #{evolve_gcno_forward.1} parent=0 // pred_fallthru
    _
  // Predicated region
  $region14: #{evolve_gcno_forward.1} parent=0 // pred_check
    _
  $region15: #{evolve_gcno_forward.1} parent=0 // pred_check_branch
    %17 = sbr.rel (0) target = $region17
  $region16: #{evolve_gcno_forward.1} parent=0 // pred_region
    _
  $region17: #{evolve_gcno_forward.1} parent=0 // pred_fallthru
    _
  // Predicated region
  $region18: #{evolve_gcno_forward.1} parent=0 // pred_check
    _
  $region19: #{evolve_gcno_forward.1} parent=0 // pred_check_branch
    %19 = sbr.rel (0) target = $region21
  $region20: #{evolve_gcno_forward.1} parent=0 // pred_region
    _
  $region21: #{evolve_gcno_forward.1} parent=0 // pred_fallthru
    _
  %v20 = vld [vmem:[%s2] sm:$0xff]
  %v21 = vld [vmem:[%s2 + $0x8] sm:$0xff]
  %v22 = vld [vmem:[%s2 + $0x10] sm:$0xff]
  %v23 = vld [vmem:[%s2 + $0x18] sm:$0xff]
  %v24 = vld [vmem:[%s2 + $0x20] sm:$0xff]
  %v25 = vld [vmem:[%s2 + $0x28] sm:$0xff]
  %v26 = vld [vmem:[%s2 + $0x30] sm:$0xff]
  %v27 = vld [vmem:[%s2 + $0x38] sm:$0xff]
  %v28 = vld [vmem:[%s2 + $0x40] sm:$0xff]
  %v29 = vld [vmem:[%s2 + $0x48] sm:$0xff]
  %v30 = vld [vmem:[%s2 + $0x50] sm:$0xff]
  %v31 = vld [vmem:[%s2 + $0x58] sm:$0xff]
  %v32 = vld [vmem:[%s2 + $0x60] sm:$0xff]
  %v33 = vld [vmem:[%s2 + $0x68] sm:$0xff]
  %v34 = vld [vmem:[%s2 + $0x70] sm:$0xff]
  %v35 = vld [vmem:[%s2 + $0x78] sm:$0xff]
  %v36 = vld [vmem:[%s2 + $0x80] sm:$0xff]
  %v37 = vld [vmem:[%s2 + $0x88] sm:$0xff]
  %v38 = vld [vmem:[%s2 + $0x90] sm:$0xff]
  %v39 = vld [vmem:[%s2 + $0x98] sm:$0xff]
  %v40 = vld [vmem:[%s3] sm:$0xff]
  %v41 = vld [vmem:[%s3 + $0x8] sm:$0xff]
  %v42 = vld [vmem:[%s3 + $0x10] sm:$0xff]
  %v43 = vld [vmem:[%s3 + $0x18] sm:$0xff]
  %v44 = vld [vmem:[%s4] sm:$0xff]
  %v45 = vld [vmem:[%s4 + $0x8] sm:$0xff]
  %v46 = vld [vmem:[%s4 + $0x10] sm:$0xff]
  %v47 = vld [vmem:[%s4 + $0x18] sm:$0xff]
  %v48 = vld [vmem:[%s4 + $0x20] sm:$0xff]
  %v49 = vld [vmem:[%s4 + $0x28] sm:$0xff]
  %v50 = vld [vmem:[%s4 + $0x30] sm:$0xff]
  %v51 = vld [vmem:[%s4 + $0x38] sm:$0xff]
  %v52 = vld [vmem:[%s4 + $0x40] sm:$0xff]
  %v53 = vld [vmem:[%s4 + $0x48] sm:$0xff]
  %v54 = vld [vmem:[%s4 + $0x50] sm:$0xff]
  %v55 = vld [vmem:[%s4 + $0x58] sm:$0xff]
  %v56 = vld [vmem:[%s1] sm:$0xff]
  %v57 = vld [vmem:[%s1 + $0x8] sm:$0xff]
  %v58 = vld [vmem:[%s1 + $0x10] sm:$0xff]
  %v59 = vld [vmem:[%s1 + $0x18] sm:$0xff]
  %vm60 = vcmask 261120
  %v62 = vsel %vm60, %v20, 0
  %v65 = vsel %vm60, %v21, 0
  %v68 = vsel %vm60, %v22, 0
  %v71 = vsel %vm60, %v23, 0
  %v74 = vsel %vm60, %v24, 0
  %v77 = vsel %vm60, %v25, 0
  %v80 = vsel %vm60, %v26, 0
  %v83 = vsel %vm60, %v27, 0
  %v86 = vsel %vm60, %v28, 0
  %v89 = vsel %vm60, %v29, 0
  %v92 = vsel %vm60, %v30, 0
  %v95 = vsel %vm60, %v31, 0
  %v98 = vsel %vm60, %v32, 0
  %v101 = vsel %vm60, %v33, 0
  %v104 = vsel %vm60, %v34, 0
  %v107 = vsel %vm60, %v35, 0
  %v110 = vsel %vm60, %v36, 0
  %v113 = vsel %vm60, %v37, 0
  %v116 = vsel %vm60, %v38, 0
  %v119 = vsel %vm60, %v39, 0
  %121 = vmatpush.msra.mxu0 0.0
  %122 = vmatpush.msra.mxu0 0.0
  %123 = vmatpush.msra.mxu0 0.0
  %124 = vmatpush.msra.mxu0 0.0
  %125 = vmatpush.msra.mxu0 0.0
  %126 = vmatpush.msra.mxu0 0.0
  %127 = vmatpush.msra.mxu0 0.0
  %128 = vmatpush.msra.mxu0 0.0
  %129 = vmatpush.msra.mxu0 0.0
  %130 = vmatpush.msra.mxu0 0.0
  %131 = vmatpush.msra.mxu0 0.0
  %132 = vmatpush.msra.mxu0 0.0
  %133 = vmatpush.msra.mxu0 %v59
  %134 = vmatpush.msra.mxu0 %v58
  %135 = vmatpush.msra.mxu0 %v57
  %136 = vmatpush.msra.mxu0 %v56
  %137 = vmatmul.f32.gmra.mxu0 %v62
  %v138 = vpop.f32.mrf.mxu0
  %v139 = vadd.f32 0.0, %v138
  %140 = vmatmul.f32.gmra.mxu0 %v65
  %v141 = vpop.f32.mrf.mxu0
  %v142 = vadd.f32 0.0, %v141
  %143 = vmatmul.f32.gmra.mxu0 %v68
  %v144 = vpop.f32.mrf.mxu0
  %v145 = vadd.f32 0.0, %v144
  %146 = vmatmul.f32.gmra.mxu0 %v71
  %v147 = vpop.f32.mrf.mxu0
  %v148 = vadd.f32 0.0, %v147
  %149 = vmatmul.f32.gmra.mxu0 %v74
  %v150 = vpop.f32.mrf.mxu0
  %v151 = vadd.f32 0.0, %v150
  %152 = vmatmul.f32.gmra.mxu0 %v77
  %v153 = vpop.f32.mrf.mxu0
  %v154 = vadd.f32 0.0, %v153
  %155 = vmatmul.f32.gmra.mxu0 %v80
  %v156 = vpop.f32.mrf.mxu0
  %v157 = vadd.f32 0.0, %v156
  %158 = vmatmul.f32.gmra.mxu0 %v83
  %v159 = vpop.f32.mrf.mxu0
  %v160 = vadd.f32 0.0, %v159
  %161 = vmatmul.f32.gmra.mxu0 %v86
  %v162 = vpop.f32.mrf.mxu0
  %v163 = vadd.f32 0.0, %v162
  %164 = vmatmul.f32.gmra.mxu0 %v89
  %v165 = vpop.f32.mrf.mxu0
  %v166 = vadd.f32 0.0, %v165
  %167 = vmatmul.f32.gmra.mxu0 %v92
  %v168 = vpop.f32.mrf.mxu0
  %v169 = vadd.f32 0.0, %v168
  %170 = vmatmul.f32.gmra.mxu0 %v95
  %v171 = vpop.f32.mrf.mxu0
  %v172 = vadd.f32 0.0, %v171
  %173 = vmatmul.f32.gmra.mxu0 %v98
  %v174 = vpop.f32.mrf.mxu0
  %v175 = vadd.f32 0.0, %v174
  %176 = vmatmul.f32.gmra.mxu0 %v101
  %v177 = vpop.f32.mrf.mxu0
  %v178 = vadd.f32 0.0, %v177
  %179 = vmatmul.f32.gmra.mxu0 %v104
  %v180 = vpop.f32.mrf.mxu0
  %v181 = vadd.f32 0.0, %v180
  %182 = vmatmul.f32.gmra.mxu0 %v107
  %v183 = vpop.f32.mrf.mxu0
  %v184 = vadd.f32 0.0, %v183
  %185 = vmatmul.f32.gmra.mxu0 %v110
  %v186 = vpop.f32.mrf.mxu0
  %v187 = vadd.f32 0.0, %v186
  %188 = vmatmul.f32.gmra.mxu0 %v113
  %v189 = vpop.f32.mrf.mxu0
  %v190 = vadd.f32 0.0, %v189
  %191 = vmatmul.f32.gmra.mxu0 %v116
  %v192 = vpop.f32.mrf.mxu0
  %v193 = vadd.f32 0.0, %v192
  %194 = vmatmul.f32.gmra.mxu0 %v119
  %v195 = vpop.f32.mrf.mxu0
  %v196 = vadd.f32 0.0, %v195
  %197 = vdwg.mxu0
  %v198 = vadd.f32 %v139, %v175
  %v199 = vadd.f32 %v142, %v178
  %v200 = vadd.f32 %v145, %v181
  %v201 = vadd.f32 %v148, %v184
  %v202 = vadd.f32 %v151, %v187
  %v203 = vadd.f32 %v154, %v190
  %v204 = vadd.f32 %v157, %v193
  %v205 = vadd.f32 %v160, %v196
  %v206 = vadd.f32 %v198, %v44
  %v207 = vadd.f32 %v199, %v45
  %v208 = vadd.f32 %v200, %v46
  %v209 = vadd.f32 %v201, %v47
  %v210 = vadd.f32 %v202, %v48
  %v211 = vadd.f32 %v203, %v49
  %v212 = vadd.f32 %v204, %v50
  %v213 = vadd.f32 %v205, %v51
  %v214 = vxor.u32 %v206, 2147483648
  %v215 = vxor.u32 %v207, 2147483648
  %v216 = vxor.u32 %v208, 2147483648
  %v217 = vxor.u32 %v209, 2147483648
  %v218 = vxor.u32 %v210, 2147483648
  %v219 = vxor.u32 %v211, 2147483648
  %v220 = vxor.u32 %v212, 2147483648
  %v221 = vxor.u32 %v213, 2147483648
  %v222 = vmul.f32 %v214, 1.442695
  %v223 = vpow.pop %v222
  %v224 = vmul.f32 %v215, 1.442695
  %v225 = vpow.pop %v224
  %v226 = vmul.f32 %v216, 1.442695
  %v227 = vpow.pop %v226
  %v228 = vmul.f32 %v217, 1.442695
  %v229 = vpow.pop %v228
  %v230 = vmul.f32 %v218, 1.442695
  %v231 = vpow.pop %v230
  %v232 = vmul.f32 %v219, 1.442695
  %v233 = vpow.pop %v232
  %v234 = vmul.f32 %v220, 1.442695
  %v235 = vpow.pop %v234
  %v236 = vmul.f32 %v221, 1.442695
  %v237 = vpow.pop %v236
  %v238 = vadd.f32 %v223, 1.0
  %v239 = vadd.f32 %v225, 1.0
  %v240 = vadd.f32 %v227, 1.0
  %v241 = vadd.f32 %v229, 1.0
  %v242 = vadd.f32 %v231, 1.0
  %v243 = vadd.f32 %v233, 1.0
  %v244 = vadd.f32 %v235, 1.0
  %v245 = vadd.f32 %v237, 1.0
  %v246 = vrcp.pop %v238
  %v247 = vmul.f32 %v238, %v246
  %v248 = vsub.f32 1.0, %v247
  %v249 = vmul.f32 %v246, %v248
  %v250 = vadd.f32 %v246, %v249
  %vm251 = vweird.f32 %v238
  %vm252 = vweird.f32 %v246
  %vm253 = vmor %vm251, %vm252
  %v254 = vsel %vm253, %v246, %v250
  %v255 = vand.u32 2147483647, %v238
  %vm256 = vcmp.eq.f32.partialorder %v255, 8.507059e+37
  %v257 = vand.u32 %v238, 2147483648
  %v258 = vor.u32 1.1754944e-38, %v257
  %v259 = vsel %vm256, %v258, %v254
  %v260 = vmul.f32 1.0, %v259
  %v261 = vrcp.pop %v239
  %v262 = vmul.f32 %v239, %v261
  %v263 = vsub.f32 1.0, %v262
  %v264 = vmul.f32 %v261, %v263
  %v265 = vadd.f32 %v261, %v264
  %vm266 = vweird.f32 %v239
  %vm267 = vweird.f32 %v261
  %vm268 = vmor %vm266, %vm267
  %v269 = vsel %vm268, %v261, %v265
  %v270 = vand.u32 2147483647, %v239
  %vm271 = vcmp.eq.f32.partialorder %v270, 8.507059e+37
  %v272 = vand.u32 %v239, 2147483648
  %v273 = vor.u32 1.1754944e-38, %v272
  %v274 = vsel %vm271, %v273, %v269
  %v275 = vmul.f32 1.0, %v274
  %v276 = vrcp.pop %v240
  %v277 = vmul.f32 %v240, %v276
  %v278 = vsub.f32 1.0, %v277
  %v279 = vmul.f32 %v276, %v278
  %v280 = vadd.f32 %v276, %v279
  %vm281 = vweird.f32 %v240
  %vm282 = vweird.f32 %v276
  %vm283 = vmor %vm281, %vm282
  %v284 = vsel %vm283, %v276, %v280
  %v285 = vand.u32 2147483647, %v240
  %vm286 = vcmp.eq.f32.partialorder %v285, 8.507059e+37
  %v287 = vand.u32 %v240, 2147483648
  %v288 = vor.u32 1.1754944e-38, %v287
  %v289 = vsel %vm286, %v288, %v284
  %v290 = vmul.f32 1.0, %v289
  %v291 = vrcp.pop %v241
  %v292 = vmul.f32 %v241, %v291
  %v293 = vsub.f32 1.0, %v292
  %v294 = vmul.f32 %v291, %v293
  %v295 = vadd.f32 %v291, %v294
  %vm296 = vweird.f32 %v241
  %vm297 = vweird.f32 %v291
  %vm298 = vmor %vm296, %vm297
  %v299 = vsel %vm298, %v291, %v295
  %v300 = vand.u32 2147483647, %v241
  %vm301 = vcmp.eq.f32.partialorder %v300, 8.507059e+37
  %v302 = vand.u32 %v241, 2147483648
  %v303 = vor.u32 1.1754944e-38, %v302
  %v304 = vsel %vm301, %v303, %v299
  %v305 = vmul.f32 1.0, %v304
  %v306 = vrcp.pop %v242
  %v307 = vmul.f32 %v242, %v306
  %v308 = vsub.f32 1.0, %v307
  %v309 = vmul.f32 %v306, %v308
  %v310 = vadd.f32 %v306, %v309
  %vm311 = vweird.f32 %v242
  %vm312 = vweird.f32 %v306
  %vm313 = vmor %vm311, %vm312
  %v314 = vsel %vm313, %v306, %v310
  %v315 = vand.u32 2147483647, %v242
  %vm316 = vcmp.eq.f32.partialorder %v315, 8.507059e+37
  %v317 = vand.u32 %v242, 2147483648
  %v318 = vor.u32 1.1754944e-38, %v317
  %v319 = vsel %vm316, %v318, %v314
  %v320 = vmul.f32 1.0, %v319
  %v321 = vrcp.pop %v243
  %v322 = vmul.f32 %v243, %v321
  %v323 = vsub.f32 1.0, %v322
  %v324 = vmul.f32 %v321, %v323
  %v325 = vadd.f32 %v321, %v324
  %vm326 = vweird.f32 %v243
  %vm327 = vweird.f32 %v321
  %vm328 = vmor %vm326, %vm327
  %v329 = vsel %vm328, %v321, %v325
  %v330 = vand.u32 2147483647, %v243
  %vm331 = vcmp.eq.f32.partialorder %v330, 8.507059e+37
  %v332 = vand.u32 %v243, 2147483648
  %v333 = vor.u32 1.1754944e-38, %v332
  %v334 = vsel %vm331, %v333, %v329
  %v335 = vmul.f32 1.0, %v334
  %v336 = vrcp.pop %v244
  %v337 = vmul.f32 %v244, %v336
  %v338 = vsub.f32 1.0, %v337
  %v339 = vmul.f32 %v336, %v338
  %v340 = vadd.f32 %v336, %v339
  %vm341 = vweird.f32 %v244
  %vm342 = vweird.f32 %v336
  %vm343 = vmor %vm341, %vm342
  %v344 = vsel %vm343, %v336, %v340
  %v345 = vand.u32 2147483647, %v244
  %vm346 = vcmp.eq.f32.partialorder %v345, 8.507059e+37
  %v347 = vand.u32 %v244, 2147483648
  %v348 = vor.u32 1.1754944e-38, %v347
  %v349 = vsel %vm346, %v348, %v344
  %v350 = vmul.f32 1.0, %v349
  %v351 = vrcp.pop %v245
  %v352 = vmul.f32 %v245, %v351
  %v353 = vsub.f32 1.0, %v352
  %v354 = vmul.f32 %v351, %v353
  %v355 = vadd.f32 %v351, %v354
  %vm356 = vweird.f32 %v245
  %vm357 = vweird.f32 %v351
  %vm358 = vmor %vm356, %vm357
  %v359 = vsel %vm358, %v351, %v355
  %v360 = vand.u32 2147483647, %v245
  %vm361 = vcmp.eq.f32.partialorder %v360, 8.507059e+37
  %v362 = vand.u32 %v245, 2147483648
  %v363 = vor.u32 1.1754944e-38, %v362
  %v364 = vsel %vm361, %v363, %v359
  %v365 = vmul.f32 1.0, %v364
  %v366 = vmul.f32 %v320, %v56
  %v367 = vmul.f32 %v335, %v57
  %v368 = vmul.f32 %v350, %v58
  %v369 = vmul.f32 %v365, %v59
  %v371 = vsel %vm60, %v40, 0
  %v374 = vsel %vm60, %v41, 0
  %v377 = vsel %vm60, %v42, 0
  %v380 = vsel %vm60, %v43, 0
  %382 = vmatpush.msra.mxu0 0.0
  %383 = vmatpush.msra.mxu0 0.0
  %384 = vmatpush.msra.mxu0 0.0
  %385 = vmatpush.msra.mxu0 0.0
  %386 = vmatpush.msra.mxu0 0.0
  %387 = vmatpush.msra.mxu0 0.0
  %388 = vmatpush.msra.mxu0 0.0
  %389 = vmatpush.msra.mxu0 0.0
  %390 = vmatpush.msra.mxu0 0.0
  %391 = vmatpush.msra.mxu0 0.0
  %392 = vmatpush.msra.mxu0 0.0
  %393 = vmatpush.msra.mxu0 0.0
  %394 = vmatpush.msra.mxu0 %v369
  %395 = vmatpush.msra.mxu0 %v368
  %396 = vmatpush.msra.mxu0 %v367
  %397 = vmatpush.msra.mxu0 %v366
  %398 = vmatmul.f32.gmra.mxu0 %v371
  %v399 = vpop.f32.mrf.mxu0
  %v400 = vadd.f32 0.0, %v399
  %401 = vmatmul.f32.gmra.mxu0 %v374
  %v402 = vpop.f32.mrf.mxu0
  %v403 = vadd.f32 0.0, %v402
  %404 = vmatmul.f32.gmra.mxu0 %v377
  %v405 = vpop.f32.mrf.mxu0
  %v406 = vadd.f32 0.0, %v405
  %407 = vmatmul.f32.gmra.mxu0 %v380
  %v408 = vpop.f32.mrf.mxu0
  %v409 = vadd.f32 0.0, %v408
  %410 = vdwg.mxu0
  %v411 = vadd.f32 %v163, %v400
  %v412 = vadd.f32 %v166, %v403
  %v413 = vadd.f32 %v169, %v406
  %v414 = vadd.f32 %v172, %v409
  %v415 = vadd.f32 %v411, %v52
  %v416 = vadd.f32 %v412, %v53
  %v417 = vadd.f32 %v413, %v54
  %v418 = vadd.f32 %v414, %v55
  %v419 = vtanh.pop %v415
  %v420 = vtanh.pop %v416
  %v421 = vtanh.pop %v417
  %v422 = vtanh.pop %v418
  %v423 = vsub.f32 1.0, %v260
  %v424 = vsub.f32 1.0, %v275
  %v425 = vsub.f32 1.0, %v290
  %v426 = vsub.f32 1.0, %v305
  %v427 = vmul.f32 %v423, %v56
  %v428 = vmul.f32 %v424, %v57
  %v429 = vmul.f32 %v425, %v58
  %v430 = vmul.f32 %v426, %v59
  %v431 = vmul.f32 %v260, %v419
  %v432 = vmul.f32 %v275, %v420
  %v433 = vmul.f32 %v290, %v421
  %v434 = vmul.f32 %v305, %v422
  %v435 = vadd.f32 %v427, %v431
  %v436 = vadd.f32 %v428, %v432
  %v437 = vadd.f32 %v429, %v433
  %v438 = vadd.f32 %v430, %v434
  %v439 = vld [vmem:[%s0] sm:$0xff]
  %v440 = vld [vmem:[%s0 + $0x8] sm:$0xff]
  %v442 = vsel %vm60, %v439, 0
  %v445 = vsel %vm60, %v440, 0
  %447 = vmatpush.msra.mxu0 0.0
  %448 = vmatpush.msra.mxu0 0.0
  %449 = vmatpush.msra.mxu0 0.0
  %450 = vmatpush.msra.mxu0 0.0
  %451 = vmatpush.msra.mxu0 0.0
  %452 = vmatpush.msra.mxu0 0.0
  %453 = vmatpush.msra.mxu0 0.0
  %454 = vmatpush.msra.mxu0 0.0
  %455 = vmatpush.msra.mxu0 0.0
  %456 = vmatpush.msra.mxu0 0.0
  %457 = vmatpush.msra.mxu0 0.0
  %458 = vmatpush.msra.mxu0 0.0
  %459 = vmatpush.msra.mxu0 %v438
  %460 = vmatpush.msra.mxu0 %v437
  %461 = vmatpush.msra.mxu0 %v436
  %462 = vmatpush.msra.mxu0 %v435
  %463 = vmatmul.f32.gmra.mxu0 %v442
  %v464 = vpop.f32.mrf.mxu0
  %v465 = vadd.f32 0.0, %v464
  %466 = vmatmul.f32.gmra.mxu0 %v445
  %v467 = vpop.f32.mrf.mxu0
  %v468 = vadd.f32 0.0, %v467
  %469 = vdwg.mxu0
  %vm470 = vcmp.ge.f32.partialorder %v465, 0.0
  %vm471 = vcmp.ge.f32.partialorder %v468, 0.0
  %v472 = vmul.f32 %v465, 0.22916667
  %v473 = vmul.f32 %v468, 0.22916667
  %v474 = vsel %vm470, %v465, %v472
  %v475 = vsel %vm471, %v468, %v473
  %476 = vst.msk [vmem:[%s5] sm:$0xff] %vm60, %v474
  %477 = vst.msk [vmem:[%s5 + $0x8] sm:$0xff] %vm60, %v475
  %478 = vmatpush.msra.mxu0 0.0
  %479 = vmatpush.msra.mxu0 0.0
  %480 = vmatpush.msra.mxu0 0.0
  %481 = vmatpush.msra.mxu0 0.0
  %482 = vmatpush.msra.mxu0 0.0
  %483 = vmatpush.msra.mxu0 0.0
  %484 = vmatpush.msra.mxu0 0.0
  %485 = vmatpush.msra.mxu0 0.0
  %486 = vmatpush.msra.mxu0 0.0
  %487 = vmatpush.msra.mxu0 0.0
  %488 = vmatpush.msra.mxu0 0.0
  %489 = vmatpush.msra.mxu0 0.0
  %490 = vmatpush.msra.mxu0 %v438
  %491 = vmatpush.msra.mxu0 %v437
  %492 = vmatpush.msra.mxu0 %v436
  %493 = vmatpush.msra.mxu0 %v435
  %494 = vmatmul.f32.gmra.mxu0 %v62
  %v495 = vpop.f32.mrf.mxu0
  %v496 = vadd.f32 0.0, %v495
  %497 = vmatmul.f32.gmra.mxu0 %v65
  %v498 = vpop.f32.mrf.mxu0
  %v499 = vadd.f32 0.0, %v498
  %500 = vmatmul.f32.gmra.mxu0 %v68
  %v501 = vpop.f32.mrf.mxu0
  %v502 = vadd.f32 0.0, %v501
  %503 = vmatmul.f32.gmra.mxu0 %v71
  %v504 = vpop.f32.mrf.mxu0
  %v505 = vadd.f32 0.0, %v504
  %506 = vmatmul.f32.gmra.mxu0 %v74
  %v507 = vpop.f32.mrf.mxu0
  %v508 = vadd.f32 0.0, %v507
  %509 = vmatmul.f32.gmra.mxu0 %v77
  %v510 = vpop.f32.mrf.mxu0
  %v511 = vadd.f32 0.0, %v510
  %512 = vmatmul.f32.gmra.mxu0 %v80
  %v513 = vpop.f32.mrf.mxu0
  %v514 = vadd.f32 0.0, %v513
  %515 = vmatmul.f32.gmra.mxu0 %v83
  %v516 = vpop.f32.mrf.mxu0
  %v517 = vadd.f32 0.0, %v516
  %518 = vmatmul.f32.gmra.mxu0 %v86
  %v519 = vpop.f32.mrf.mxu0
  %v520 = vadd.f32 0.0, %v519
  %521 = vmatmul.f32.gmra.mxu0 %v89
  %v522 = vpop.f32.mrf.mxu0
  %v523 = vadd.f32 0.0, %v522
  %524 = vmatmul.f32.gmra.mxu0 %v92
  %v525 = vpop.f32.mrf.mxu0
  %v526 = vadd.f32 0.0, %v525
  %527 = vmatmul.f32.gmra.mxu0 %v95
  %v528 = vpop.f32.mrf.mxu0
  %v529 = vadd.f32 0.0, %v528
  %530 = vmatmul.f32.gmra.mxu0 %v98
  %v531 = vpop.f32.mrf.mxu0
  %v532 = vadd.f32 0.0, %v531
  %533 = vmatmul.f32.gmra.mxu0 %v101
  %v534 = vpop.f32.mrf.mxu0
  %v535 = vadd.f32 0.0, %v534
  %536 = vmatmul.f32.gmra.mxu0 %v104
  %v537 = vpop.f32.mrf.mxu0
  %v538 = vadd.f32 0.0, %v537
  %539 = vmatmul.f32.gmra.mxu0 %v107
  %v540 = vpop.f32.mrf.mxu0
  %v541 = vadd.f32 0.0, %v540
  %542 = vmatmul.f32.gmra.mxu0 %v110
  %v543 = vpop.f32.mrf.mxu0
  %v544 = vadd.f32 0.0, %v543
  %545 = vmatmul.f32.gmra.mxu0 %v113
  %v546 = vpop.f32.mrf.mxu0
  %v547 = vadd.f32 0.0, %v546
  %548 = vmatmul.f32.gmra.mxu0 %v116
  %v549 = vpop.f32.mrf.mxu0
  %v550 = vadd.f32 0.0, %v549
  %551 = vmatmul.f32.gmra.mxu0 %v119
  %v552 = vpop.f32.mrf.mxu0
  %v553 = vadd.f32 0.0, %v552
  %554 = vdwg.mxu0
  %v555 = vadd.f32 %v496, %v532
  %v556 = vadd.f32 %v499, %v535
  %v557 = vadd.f32 %v502, %v538
  %v558 = vadd.f32 %v505, %v541
  %v559 = vadd.f32 %v508, %v544
  %v560 = vadd.f32 %v511, %v547
  %v561 = vadd.f32 %v514, %v550
  %v562 = vadd.f32 %v517, %v553
  %v563 = vadd.f32 %v555, %v44
  %v564 = vadd.f32 %v556, %v45
  %v565 = vadd.f32 %v557, %v46
  %v566 = vadd.f32 %v558, %v47
  %v567 = vadd.f32 %v559, %v48
  %v568 = vadd.f32 %v560, %v49
  %v569 = vadd.f32 %v561, %v50
  %v570 = vadd.f32 %v562, %v51
  %v571 = vxor.u32 %v563, 2147483648
  %v572 = vxor.u32 %v564, 2147483648
  %v573 = vxor.u32 %v565, 2147483648
  %v574 = vxor.u32 %v566, 2147483648
  %v575 = vxor.u32 %v567, 2147483648
  %v576 = vxor.u32 %v568, 2147483648
  %v577 = vxor.u32 %v569, 2147483648
  %v578 = vxor.u32 %v570, 2147483648
  %v579 = vmul.f32 %v571, 1.442695
  %v580 = vpow.pop %v579
  %v581 = vmul.f32 %v572, 1.442695
  %v582 = vpow.pop %v581
  %v583 = vmul.f32 %v573, 1.442695
  %v584 = vpow.pop %v583
  %v585 = vmul.f32 %v574, 1.442695
  %v586 = vpow.pop %v585
  %v587 = vmul.f32 %v575, 1.442695
  %v588 = vpow.pop %v587
  %v589 = vmul.f32 %v576, 1.442695
  %v590 = vpow.pop %v589
  %v591 = vmul.f32 %v577, 1.442695
  %v592 = vpow.pop %v591
  %v593 = vmul.f32 %v578, 1.442695
  %v594 = vpow.pop %v593
  %v595 = vadd.f32 %v580, 1.0
  %v596 = vadd.f32 %v582, 1.0
  %v597 = vadd.f32 %v584, 1.0
  %v598 = vadd.f32 %v586, 1.0
  %v599 = vadd.f32 %v588, 1.0
  %v600 = vadd.f32 %v590, 1.0
  %v601 = vadd.f32 %v592, 1.0
  %v602 = vadd.f32 %v594, 1.0
  %v603 = vrcp.pop %v595
  %v604 = vmul.f32 %v595, %v603
  %v605 = vsub.f32 1.0, %v604
  %v606 = vmul.f32 %v603, %v605
  %v607 = vadd.f32 %v603, %v606
  %vm608 = vweird.f32 %v595
  %vm609 = vweird.f32 %v603
  %vm610 = vmor %vm608, %vm609
  %v611 = vsel %vm610, %v603, %v607
  %v612 = vand.u32 2147483647, %v595
  %vm613 = vcmp.eq.f32.partialorder %v612, 8.507059e+37
  %v614 = vand.u32 %v595, 2147483648
  %v615 = vor.u32 1.1754944e-38, %v614
  %v616 = vsel %vm613, %v615, %v611
  %v617 = vmul.f32 1.0, %v616
  %v618 = vrcp.pop %v596
  %v619 = vmul.f32 %v596, %v618
  %v620 = vsub.f32 1.0, %v619
  %v621 = vmul.f32 %v618, %v620
  %v622 = vadd.f32 %v618, %v621
  %vm623 = vweird.f32 %v596
  %vm624 = vweird.f32 %v618
  %vm625 = vmor %vm623, %vm624
  %v626 = vsel %vm625, %v618, %v622
  %v627 = vand.u32 2147483647, %v596
  %vm628 = vcmp.eq.f32.partialorder %v627, 8.507059e+37
  %v629 = vand.u32 %v596, 2147483648
  %v630 = vor.u32 1.1754944e-38, %v629
  %v631 = vsel %vm628, %v630, %v626
  %v632 = vmul.f32 1.0, %v631
  %v633 = vrcp.pop %v597
  %v634 = vmul.f32 %v597, %v633
  %v635 = vsub.f32 1.0, %v634
  %v636 = vmul.f32 %v633, %v635
  %v637 = vadd.f32 %v633, %v636
  %vm638 = vweird.f32 %v597
  %vm639 = vweird.f32 %v633
  %vm640 = vmor %vm638, %vm639
  %v641 = vsel %vm640, %v633, %v637
  %v642 = vand.u32 2147483647, %v597
  %vm643 = vcmp.eq.f32.partialorder %v642, 8.507059e+37
  %v644 = vand.u32 %v597, 2147483648
  %v645 = vor.u32 1.1754944e-38, %v644
  %v646 = vsel %vm643, %v645, %v641
  %v647 = vmul.f32 1.0, %v646
  %v648 = vrcp.pop %v598
  %v649 = vmul.f32 %v598, %v648
  %v650 = vsub.f32 1.0, %v649
  %v651 = vmul.f32 %v648, %v650
  %v652 = vadd.f32 %v648, %v651
  %vm653 = vweird.f32 %v598
  %vm654 = vweird.f32 %v648
  %vm655 = vmor %vm653, %vm654
  %v656 = vsel %vm655, %v648, %v652
  %v657 = vand.u32 2147483647, %v598
  %vm658 = vcmp.eq.f32.partialorder %v657, 8.507059e+37
  %v659 = vand.u32 %v598, 2147483648
  %v660 = vor.u32 1.1754944e-38, %v659
  %v661 = vsel %vm658, %v660, %v656
  %v662 = vmul.f32 1.0, %v661
  %v663 = vrcp.pop %v599
  %v664 = vmul.f32 %v599, %v663
  %v665 = vsub.f32 1.0, %v664
  %v666 = vmul.f32 %v663, %v665
  %v667 = vadd.f32 %v663, %v666
  %vm668 = vweird.f32 %v599
  %vm669 = vweird.f32 %v663
  %vm670 = vmor %vm668, %vm669
  %v671 = vsel %vm670, %v663, %v667
  %v672 = vand.u32 2147483647, %v599
  %vm673 = vcmp.eq.f32.partialorder %v672, 8.507059e+37
  %v674 = vand.u32 %v599, 2147483648
  %v675 = vor.u32 1.1754944e-38, %v674
  %v676 = vsel %vm673, %v675, %v671
  %v677 = vmul.f32 1.0, %v676
  %v678 = vrcp.pop %v600
  %v679 = vmul.f32 %v600, %v678
  %v680 = vsub.f32 1.0, %v679
  %v681 = vmul.f32 %v678, %v680
  %v682 = vadd.f32 %v678, %v681
  %vm683 = vweird.f32 %v600
  %vm684 = vweird.f32 %v678
  %vm685 = vmor %vm683, %vm684
  %v686 = vsel %vm685, %v678, %v682
  %v687 = vand.u32 2147483647, %v600
  %vm688 = vcmp.eq.f32.partialorder %v687, 8.507059e+37
  %v689 = vand.u32 %v600, 2147483648
  %v690 = vor.u32 1.1754944e-38, %v689
  %v691 = vsel %vm688, %v690, %v686
  %v692 = vmul.f32 1.0, %v691
  %v693 = vrcp.pop %v601
  %v694 = vmul.f32 %v601, %v693
  %v695 = vsub.f32 1.0, %v694
  %v696 = vmul.f32 %v693, %v695
  %v697 = vadd.f32 %v693, %v696
  %vm698 = vweird.f32 %v601
  %vm699 = vweird.f32 %v693
  %vm700 = vmor %vm698, %vm699
  %v701 = vsel %vm700, %v693, %v697
  %v702 = vand.u32 2147483647, %v601
  %vm703 = vcmp.eq.f32.partialorder %v702, 8.507059e+37
  %v704 = vand.u32 %v601, 2147483648
  %v705 = vor.u32 1.1754944e-38, %v704
  %v706 = vsel %vm703, %v705, %v701
  %v707 = vmul.f32 1.0, %v706
  %v708 = vrcp.pop %v602
  %v709 = vmul.f32 %v602, %v708
  %v710 = vsub.f32 1.0, %v709
  %v711 = vmul.f32 %v708, %v710
  %v712 = vadd.f32 %v708, %v711
  %vm713 = vweird.f32 %v602
  %vm714 = vweird.f32 %v708
  %vm715 = vmor %vm713, %vm714
  %v716 = vsel %vm715, %v708, %v712
  %v717 = vand.u32 2147483647, %v602
  %vm718 = vcmp.eq.f32.partialorder %v717, 8.507059e+37
  %v719 = vand.u32 %v602, 2147483648
  %v720 = vor.u32 1.1754944e-38, %v719
  %v721 = vsel %vm718, %v720, %v716
  %v722 = vmul.f32 1.0, %v721
  %v723 = vmul.f32 %v677, %v435
  %v724 = vmul.f32 %v692, %v436
  %v725 = vmul.f32 %v707, %v437
  %v726 = vmul.f32 %v722, %v438
  %727 = vmatpush.msra.mxu0 0.0
  %728 = vmatpush.msra.mxu0 0.0
  %729 = vmatpush.msra.mxu0 0.0
  %730 = vmatpush.msra.mxu0 0.0
  %731 = vmatpush.msra.mxu0 0.0
  %732 = vmatpush.msra.mxu0 0.0
  %733 = vmatpush.msra.mxu0 0.0
  %734 = vmatpush.msra.mxu0 0.0
  %735 = vmatpush.msra.mxu0 0.0
  %736 = vmatpush.msra.mxu0 0.0
  %737 = vmatpush.msra.mxu0 0.0
  %738 = vmatpush.msra.mxu0 0.0
  %739 = vmatpush.msra.mxu0 %v726
  %740 = vmatpush.msra.mxu0 %v725
  %741 = vmatpush.msra.mxu0 %v724
  %742 = vmatpush.msra.mxu0 %v723
  %743 = vmatmul.f32.gmra.mxu0 %v371
  %v744 = vpop.f32.mrf.mxu0
  %v745 = vadd.f32 0.0, %v744
  %746 = vmatmul.f32.gmra.mxu0 %v374
  %v747 = vpop.f32.mrf.mxu0
  %v748 = vadd.f32 0.0, %v747
  %749 = vmatmul.f32.gmra.mxu0 %v377
  %v750 = vpop.f32.mrf.mxu0
  %v751 = vadd.f32 0.0, %v750
  %752 = vmatmul.f32.gmra.mxu0 %v380
  %v753 = vpop.f32.mrf.mxu0
  %v754 = vadd.f32 0.0, %v753
  %755 = vdwg.mxu0
  %v756 = vadd.f32 %v520, %v745
  %v757 = vadd.f32 %v523, %v748
  %v758 = vadd.f32 %v526, %v751
  %v759 = vadd.f32 %v529, %v754
  %v760 = vadd.f32 %v756, %v52
  %v761 = vadd.f32 %v757, %v53
  %v762 = vadd.f32 %v758, %v54
  %v763 = vadd.f32 %v759, %v55
  %v764 = vtanh.pop %v760
  %v765 = vtanh.pop %v761
  %v766 = vtanh.pop %v762
  %v767 = vtanh.pop %v763
  %v768 = vsub.f32 1.0, %v617
  %v769 = vsub.f32 1.0, %v632
  %v770 = vsub.f32 1.0, %v647
  %v771 = vsub.f32 1.0, %v662
  %v772 = vmul.f32 %v768, %v435
  %v773 = vmul.f32 %v769, %v436
  %v774 = vmul.f32 %v770, %v437
  %v775 = vmul.f32 %v771, %v438
  %v776 = vmul.f32 %v617, %v764
  %v777 = vmul.f32 %v632, %v765
  %v778 = vmul.f32 %v647, %v766
  %v779 = vmul.f32 %v662, %v767
  %v780 = vadd.f32 %v772, %v776
  %v781 = vadd.f32 %v773, %v777
  %v782 = vadd.f32 %v774, %v778
  %v783 = vadd.f32 %v775, %v779
  %s784 = scalar_lea.vmem %s0, 16
  %v785 = vld [vmem:[%s784] sm:$0xff]
  %v786 = vld [vmem:[%s784 + $0x8] sm:$0xff]
  %v788 = vsel %vm60, %v785, 0
  %v791 = vsel %vm60, %v786, 0
  %793 = vmatpush.msra.mxu0 0.0
  %794 = vmatpush.msra.mxu0 0.0
  %795 = vmatpush.msra.mxu0 0.0
  %796 = vmatpush.msra.mxu0 0.0
  %797 = vmatpush.msra.mxu0 0.0
  %798 = vmatpush.msra.mxu0 0.0
  %799 = vmatpush.msra.mxu0 0.0
  %800 = vmatpush.msra.mxu0 0.0
  %801 = vmatpush.msra.mxu0 0.0
  %802 = vmatpush.msra.mxu0 0.0
  %803 = vmatpush.msra.mxu0 0.0
  %804 = vmatpush.msra.mxu0 0.0
  %805 = vmatpush.msra.mxu0 %v783
  %806 = vmatpush.msra.mxu0 %v782
  %807 = vmatpush.msra.mxu0 %v781
  %808 = vmatpush.msra.mxu0 %v780
  %809 = vmatmul.f32.gmra.mxu0 %v788
  %v810 = vpop.f32.mrf.mxu0
  %v811 = vadd.f32 0.0, %v810
  %812 = vmatmul.f32.gmra.mxu0 %v791
  %v813 = vpop.f32.mrf.mxu0
  %v814 = vadd.f32 0.0, %v813
  %815 = vdwg.mxu0
  %vm816 = vcmp.ge.f32.partialorder %v811, 0.0
  %vm817 = vcmp.ge.f32.partialorder %v814, 0.0
  %v818 = vmul.f32 %v811, 0.22916667
  %v819 = vmul.f32 %v814, 0.22916667
  %v820 = vsel %vm816, %v811, %v818
  %v821 = vsel %vm817, %v814, %v819
  %s822 = scalar_lea.vmem %s5, 16
  %823 = vst.msk [vmem:[%s822] sm:$0xff] %vm60, %v820
  %824 = vst.msk [vmem:[%s822 + $0x8] sm:$0xff] %vm60, %v821
  %825 = vmatpush.msra.mxu0 0.0
  %826 = vmatpush.msra.mxu0 0.0
  %827 = vmatpush.msra.mxu0 0.0
  %828 = vmatpush.msra.mxu0 0.0
  %829 = vmatpush.msra.mxu0 0.0
  %830 = vmatpush.msra.mxu0 0.0
  %831 = vmatpush.msra.mxu0 0.0
  %832 = vmatpush.msra.mxu0 0.0
  %833 = vmatpush.msra.mxu0 0.0
  %834 = vmatpush.msra.mxu0 0.0
  %835 = vmatpush.msra.mxu0 0.0
  %836 = vmatpush.msra.mxu0 0.0
  %837 = vmatpush.msra.mxu0 %v783
  %838 = vmatpush.msra.mxu0 %v782
  %839 = vmatpush.msra.mxu0 %v781
  %840 = vmatpush.msra.mxu0 %v780
  %841 = vmatmul.f32.gmra.mxu0 %v62
  %v842 = vpop.f32.mrf.mxu0
  %v843 = vadd.f32 0.0, %v842
  %844 = vmatmul.f32.gmra.mxu0 %v65
  %v845 = vpop.f32.mrf.mxu0
  %v846 = vadd.f32 0.0, %v845
  %847 = vmatmul.f32.gmra.mxu0 %v68
  %v848 = vpop.f32.mrf.mxu0
  %v849 = vadd.f32 0.0, %v848
  %850 = vmatmul.f32.gmra.mxu0 %v71
  %v851 = vpop.f32.mrf.mxu0
  %v852 = vadd.f32 0.0, %v851
  %853 = vmatmul.f32.gmra.mxu0 %v74
  %v854 = vpop.f32.mrf.mxu0
  %v855 = vadd.f32 0.0, %v854
  %856 = vmatmul.f32.gmra.mxu0 %v77
  %v857 = vpop.f32.mrf.mxu0
  %v858 = vadd.f32 0.0, %v857
  %859 = vmatmul.f32.gmra.mxu0 %v80
  %v860 = vpop.f32.mrf.mxu0
  %v861 = vadd.f32 0.0, %v860
  %862 = vmatmul.f32.gmra.mxu0 %v83
  %v863 = vpop.f32.mrf.mxu0
  %v864 = vadd.f32 0.0, %v863
  %865 = vmatmul.f32.gmra.mxu0 %v86
  %v866 = vpop.f32.mrf.mxu0
  %v867 = vadd.f32 0.0, %v866
  %868 = vmatmul.f32.gmra.mxu0 %v89
  %v869 = vpop.f32.mrf.mxu0
  %v870 = vadd.f32 0.0, %v869
  %871 = vmatmul.f32.gmra.mxu0 %v92
  %v872 = vpop.f32.mrf.mxu0
  %v873 = vadd.f32 0.0, %v872
  %874 = vmatmul.f32.gmra.mxu0 %v95
  %v875 = vpop.f32.mrf.mxu0
  %v876 = vadd.f32 0.0, %v875
  %877 = vmatmul.f32.gmra.mxu0 %v98
  %v878 = vpop.f32.mrf.mxu0
  %v879 = vadd.f32 0.0, %v878
  %880 = vmatmul.f32.gmra.mxu0 %v101
  %v881 = vpop.f32.mrf.mxu0
  %v882 = vadd.f32 0.0, %v881
  %883 = vmatmul.f32.gmra.mxu0 %v104
  %v884 = vpop.f32.mrf.mxu0
  %v885 = vadd.f32 0.0, %v884
  %886 = vmatmul.f32.gmra.mxu0 %v107
  %v887 = vpop.f32.mrf.mxu0
  %v888 = vadd.f32 0.0, %v887
  %889 = vmatmul.f32.gmra.mxu0 %v110
  %v890 = vpop.f32.mrf.mxu0
  %v891 = vadd.f32 0.0, %v890
  %892 = vmatmul.f32.gmra.mxu0 %v113
  %v893 = vpop.f32.mrf.mxu0
  %v894 = vadd.f32 0.0, %v893
  %895 = vmatmul.f32.gmra.mxu0 %v116
  %v896 = vpop.f32.mrf.mxu0
  %v897 = vadd.f32 0.0, %v896
  %898 = vmatmul.f32.gmra.mxu0 %v119
  %v899 = vpop.f32.mrf.mxu0
  %v900 = vadd.f32 0.0, %v899
  %901 = vdwg.mxu0
  %v902 = vadd.f32 %v843, %v879
  %v903 = vadd.f32 %v846, %v882
  %v904 = vadd.f32 %v849, %v885
  %v905 = vadd.f32 %v852, %v888
  %v906 = vadd.f32 %v855, %v891
  %v907 = vadd.f32 %v858, %v894
  %v908 = vadd.f32 %v861, %v897
  %v909 = vadd.f32 %v864, %v900
  %v910 = vadd.f32 %v902, %v44
  %v911 = vadd.f32 %v903, %v45
  %v912 = vadd.f32 %v904, %v46
  %v913 = vadd.f32 %v905, %v47
  %v914 = vadd.f32 %v906, %v48
  %v915 = vadd.f32 %v907, %v49
  %v916 = vadd.f32 %v908, %v50
  %v917 = vadd.f32 %v909, %v51
  %v918 = vxor.u32 %v910, 2147483648
  %v919 = vxor.u32 %v911, 2147483648
  %v920 = vxor.u32 %v912, 2147483648
  %v921 = vxor.u32 %v913, 2147483648
  %v922 = vxor.u32 %v914, 2147483648
  %v923 = vxor.u32 %v915, 2147483648
  %v924 = vxor.u32 %v916, 2147483648
  %v925 = vxor.u32 %v917, 2147483648
  %v926 = vmul.f32 %v918, 1.442695
  %v927 = vpow.pop %v926
  %v928 = vmul.f32 %v919, 1.442695
  %v929 = vpow.pop %v928
  %v930 = vmul.f32 %v920, 1.442695
  %v931 = vpow.pop %v930
  %v932 = vmul.f32 %v921, 1.442695
  %v933 = vpow.pop %v932
  %v934 = vmul.f32 %v922, 1.442695
  %v935 = vpow.pop %v934
  %v936 = vmul.f32 %v923, 1.442695
  %v937 = vpow.pop %v936
  %v938 = vmul.f32 %v924, 1.442695
  %v939 = vpow.pop %v938
  %v940 = vmul.f32 %v925, 1.442695
  %v941 = vpow.pop %v940
  %v942 = vadd.f32 %v927, 1.0
  %v943 = vadd.f32 %v929, 1.0
  %v944 = vadd.f32 %v931, 1.0
  %v945 = vadd.f32 %v933, 1.0
  %v946 = vadd.f32 %v935, 1.0
  %v947 = vadd.f32 %v937, 1.0
  %v948 = vadd.f32 %v939, 1.0
  %v949 = vadd.f32 %v941, 1.0
  %v950 = vrcp.pop %v942
  %v951 = vmul.f32 %v942, %v950
  %v952 = vsub.f32 1.0, %v951
  %v953 = vmul.f32 %v950, %v952
  %v954 = vadd.f32 %v950, %v953
  %vm955 = vweird.f32 %v942
  %vm956 = vweird.f32 %v950
  %vm957 = vmor %vm955, %vm956
  %v958 = vsel %vm957, %v950, %v954
  %v959 = vand.u32 2147483647, %v942
  %vm960 = vcmp.eq.f32.partialorder %v959, 8.507059e+37
  %v961 = vand.u32 %v942, 2147483648
  %v962 = vor.u32 1.1754944e-38, %v961
  %v963 = vsel %vm960, %v962, %v958
  %v964 = vmul.f32 1.0, %v963
  %v965 = vrcp.pop %v943
  %v966 = vmul.f32 %v943, %v965
  %v967 = vsub.f32 1.0, %v966
  %v968 = vmul.f32 %v965, %v967
  %v969 = vadd.f32 %v965, %v968
  %vm970 = vweird.f32 %v943
  %vm971 = vweird.f32 %v965
  %vm972 = vmor %vm970, %vm971
  %v973 = vsel %vm972, %v965, %v969
  %v974 = vand.u32 2147483647, %v943
  %vm975 = vcmp.eq.f32.partialorder %v974, 8.507059e+37
  %v976 = vand.u32 %v943, 2147483648
  %v977 = vor.u32 1.1754944e-38, %v976
  %v978 = vsel %vm975, %v977, %v973
  %v979 = vmul.f32 1.0, %v978
  %v980 = vrcp.pop %v944
  %v981 = vmul.f32 %v944, %v980
  %v982 = vsub.f32 1.0, %v981
  %v983 = vmul.f32 %v980, %v982
  %v984 = vadd.f32 %v980, %v983
  %vm985 = vweird.f32 %v944
  %vm986 = vweird.f32 %v980
  %vm987 = vmor %vm985, %vm986
  %v988 = vsel %vm987, %v980, %v984
  %v989 = vand.u32 2147483647, %v944
  %vm990 = vcmp.eq.f32.partialorder %v989, 8.507059e+37
  %v991 = vand.u32 %v944, 2147483648
  %v992 = vor.u32 1.1754944e-38, %v991
  %v993 = vsel %vm990, %v992, %v988
  %v994 = vmul.f32 1.0, %v993
  %v995 = vrcp.pop %v945
  %v996 = vmul.f32 %v945, %v995
  %v997 = vsub.f32 1.0, %v996
  %v998 = vmul.f32 %v995, %v997
  %v999 = vadd.f32 %v995, %v998
  %vm1000 = vweird.f32 %v945
  %vm1001 = vweird.f32 %v995
  %vm1002 = vmor %vm1000, %vm1001
  %v1003 = vsel %vm1002, %v995, %v999
  %v1004 = vand.u32 2147483647, %v945
  %vm1005 = vcmp.eq.f32.partialorder %v1004, 8.507059e+37
  %v1006 = vand.u32 %v945, 2147483648
  %v1007 = vor.u32 1.1754944e-38, %v1006
  %v1008 = vsel %vm1005, %v1007, %v1003
  %v1009 = vmul.f32 1.0, %v1008
  %v1010 = vrcp.pop %v946
  %v1011 = vmul.f32 %v946, %v1010
  %v1012 = vsub.f32 1.0, %v1011
  %v1013 = vmul.f32 %v1010, %v1012
  %v1014 = vadd.f32 %v1010, %v1013
  %vm1015 = vweird.f32 %v946
  %vm1016 = vweird.f32 %v1010
  %vm1017 = vmor %vm1015, %vm1016
  %v1018 = vsel %vm1017, %v1010, %v1014
  %v1019 = vand.u32 2147483647, %v946
  %vm1020 = vcmp.eq.f32.partialorder %v1019, 8.507059e+37
  %v1021 = vand.u32 %v946, 2147483648
  %v1022 = vor.u32 1.1754944e-38, %v1021
  %v1023 = vsel %vm1020, %v1022, %v1018
  %v1024 = vmul.f32 1.0, %v1023
  %v1025 = vrcp.pop %v947
  %v1026 = vmul.f32 %v947, %v1025
  %v1027 = vsub.f32 1.0, %v1026
  %v1028 = vmul.f32 %v1025, %v1027
  %v1029 = vadd.f32 %v1025, %v1028
  %vm1030 = vweird.f32 %v947
  %vm1031 = vweird.f32 %v1025
  %vm1032 = vmor %vm1030, %vm1031
  %v1033 = vsel %vm1032, %v1025, %v1029
  %v1034 = vand.u32 2147483647, %v947
  %vm1035 = vcmp.eq.f32.partialorder %v1034, 8.507059e+37
  %v1036 = vand.u32 %v947, 2147483648
  %v1037 = vor.u32 1.1754944e-38, %v1036
  %v1038 = vsel %vm1035, %v1037, %v1033
  %v1039 = vmul.f32 1.0, %v1038
  %v1040 = vrcp.pop %v948
  %v1041 = vmul.f32 %v948, %v1040
  %v1042 = vsub.f32 1.0, %v1041
  %v1043 = vmul.f32 %v1040, %v1042
  %v1044 = vadd.f32 %v1040, %v1043
  %vm1045 = vweird.f32 %v948
  %vm1046 = vweird.f32 %v1040
  %vm1047 = vmor %vm1045, %vm1046
  %v1048 = vsel %vm1047, %v1040, %v1044
  %v1049 = vand.u32 2147483647, %v948
  %vm1050 = vcmp.eq.f32.partialorder %v1049, 8.507059e+37
  %v1051 = vand.u32 %v948, 2147483648
  %v1052 = vor.u32 1.1754944e-38, %v1051
  %v1053 = vsel %vm1050, %v1052, %v1048
  %v1054 = vmul.f32 1.0, %v1053
  %v1055 = vrcp.pop %v949
  %v1056 = vmul.f32 %v949, %v1055
  %v1057 = vsub.f32 1.0, %v1056
  %v1058 = vmul.f32 %v1055, %v1057
  %v1059 = vadd.f32 %v1055, %v1058
  %vm1060 = vweird.f32 %v949
  %vm1061 = vweird.f32 %v1055
  %vm1062 = vmor %vm1060, %vm1061
  %v1063 = vsel %vm1062, %v1055, %v1059
  %v1064 = vand.u32 2147483647, %v949
  %vm1065 = vcmp.eq.f32.partialorder %v1064, 8.507059e+37
  %v1066 = vand.u32 %v949, 2147483648
  %v1067 = vor.u32 1.1754944e-38, %v1066
  %v1068 = vsel %vm1065, %v1067, %v1063
  %v1069 = vmul.f32 1.0, %v1068
  %v1070 = vmul.f32 %v1024, %v780
  %v1071 = vmul.f32 %v1039, %v781
  %v1072 = vmul.f32 %v1054, %v782
  %v1073 = vmul.f32 %v1069, %v783
  %1074 = vmatpush.msra.mxu0 0.0
  %1075 = vmatpush.msra.mxu0 0.0
  %1076 = vmatpush.msra.mxu0 0.0
  %1077 = vmatpush.msra.mxu0 0.0
  %1078 = vmatpush.msra.mxu0 0.0
  %1079 = vmatpush.msra.mxu0 0.0
  %1080 = vmatpush.msra.mxu0 0.0
  %1081 = vmatpush.msra.mxu0 0.0
  %1082 = vmatpush.msra.mxu0 0.0
  %1083 = vmatpush.msra.mxu0 0.0
  %1084 = vmatpush.msra.mxu0 0.0
  %1085 = vmatpush.msra.mxu0 0.0
  %1086 = vmatpush.msra.mxu0 %v1073
  %1087 = vmatpush.msra.mxu0 %v1072
  %1088 = vmatpush.msra.mxu0 %v1071
  %1089 = vmatpush.msra.mxu0 %v1070
  %1090 = vmatmul.f32.gmra.mxu0 %v371
  %v1091 = vpop.f32.mrf.mxu0
  %v1092 = vadd.f32 0.0, %v1091
  %1093 = vmatmul.f32.gmra.mxu0 %v374
  %v1094 = vpop.f32.mrf.mxu0
  %v1095 = vadd.f32 0.0, %v1094
  %1096 = vmatmul.f32.gmra.mxu0 %v377
  %v1097 = vpop.f32.mrf.mxu0
  %v1098 = vadd.f32 0.0, %v1097
  %1099 = vmatmul.f32.gmra.mxu0 %v380
  %v1100 = vpop.f32.mrf.mxu0
  %v1101 = vadd.f32 0.0, %v1100
  %1102 = vdwg.mxu0
  %v1103 = vadd.f32 %v867, %v1092
  %v1104 = vadd.f32 %v870, %v1095
  %v1105 = vadd.f32 %v873, %v1098
  %v1106 = vadd.f32 %v876, %v1101
  %v1107 = vadd.f32 %v1103, %v52
  %v1108 = vadd.f32 %v1104, %v53
  %v1109 = vadd.f32 %v1105, %v54
  %v1110 = vadd.f32 %v1106, %v55
  %v1111 = vtanh.pop %v1107
  %v1112 = vtanh.pop %v1108
  %v1113 = vtanh.pop %v1109
  %v1114 = vtanh.pop %v1110
  %v1115 = vsub.f32 1.0, %v964
  %v1116 = vsub.f32 1.0, %v979
  %v1117 = vsub.f32 1.0, %v994
  %v1118 = vsub.f32 1.0, %v1009
  %v1119 = vmul.f32 %v1115, %v780
  %v1120 = vmul.f32 %v1116, %v781
  %v1121 = vmul.f32 %v1117, %v782
  %v1122 = vmul.f32 %v1118, %v783
  %v1123 = vmul.f32 %v964, %v1111
  %v1124 = vmul.f32 %v979, %v1112
  %v1125 = vmul.f32 %v994, %v1113
  %v1126 = vmul.f32 %v1009, %v1114
  %v1127 = vadd.f32 %v1119, %v1123
  %v1128 = vadd.f32 %v1120, %v1124
  %v1129 = vadd.f32 %v1121, %v1125
  %v1130 = vadd.f32 %v1122, %v1126
  %s1131 = scalar_lea.vmem %s0, 32
  %v1132 = vld [vmem:[%s1131] sm:$0xff]
  %v1133 = vld [vmem:[%s1131 + $0x8] sm:$0xff]
  %v1135 = vsel %vm60, %v1132, 0
  %v1138 = vsel %vm60, %v1133, 0
  %1140 = vmatpush.msra.mxu0 0.0
  %1141 = vmatpush.msra.mxu0 0.0
  %1142 = vmatpush.msra.mxu0 0.0
  %1143 = vmatpush.msra.mxu0 0.0
  %1144 = vmatpush.msra.mxu0 0.0
  %1145 = vmatpush.msra.mxu0 0.0
  %1146 = vmatpush.msra.mxu0 0.0
  %1147 = vmatpush.msra.mxu0 0.0
  %1148 = vmatpush.msra.mxu0 0.0
  %1149 = vmatpush.msra.mxu0 0.0
  %1150 = vmatpush.msra.mxu0 0.0
  %1151 = vmatpush.msra.mxu0 0.0
  %1152 = vmatpush.msra.mxu0 %v1130
  %1153 = vmatpush.msra.mxu0 %v1129
  %1154 = vmatpush.msra.mxu0 %v1128
  %1155 = vmatpush.msra.mxu0 %v1127
  %1156 = vmatmul.f32.gmra.mxu0 %v1135
  %v1157 = vpop.f32.mrf.mxu0
  %v1158 = vadd.f32 0.0, %v1157
  %1159 = vmatmul.f32.gmra.mxu0 %v1138
  %v1160 = vpop.f32.mrf.mxu0
  %v1161 = vadd.f32 0.0, %v1160
  %1162 = vdwg.mxu0
  %vm1163 = vcmp.ge.f32.partialorder %v1158, 0.0
  %vm1164 = vcmp.ge.f32.partialorder %v1161, 0.0
  %v1165 = vmul.f32 %v1158, 0.22916667
  %v1166 = vmul.f32 %v1161, 0.22916667
  %v1167 = vsel %vm1163, %v1158, %v1165
  %v1168 = vsel %vm1164, %v1161, %v1166
  %s1169 = scalar_lea.vmem %s5, 32
  %1170 = vst.msk [vmem:[%s1169] sm:$0xff] %vm60, %v1167
  %1171 = vst.msk [vmem:[%s1169 + $0x8] sm:$0xff] %vm60, %v1168
  %1172 = vmatpush.msra.mxu0 0.0
  %1173 = vmatpush.msra.mxu0 0.0
  %1174 = vmatpush.msra.mxu0 0.0
  %1175 = vmatpush.msra.mxu0 0.0
  %1176 = vmatpush.msra.mxu0 0.0
  %1177 = vmatpush.msra.mxu0 0.0
  %1178 = vmatpush.msra.mxu0 0.0
  %1179 = vmatpush.msra.mxu0 0.0
  %1180 = vmatpush.msra.mxu0 0.0
  %1181 = vmatpush.msra.mxu0 0.0
  %1182 = vmatpush.msra.mxu0 0.0
  %1183 = vmatpush.msra.mxu0 0.0
  %1184 = vmatpush.msra.mxu0 %v1130
  %1185 = vmatpush.msra.mxu0 %v1129
  %1186 = vmatpush.msra.mxu0 %v1128
  %1187 = vmatpush.msra.mxu0 %v1127
  %1188 = vmatmul.f32.gmra.mxu0 %v62
  %v1189 = vpop.f32.mrf.mxu0
  %v1190 = vadd.f32 0.0, %v1189
  %1191 = vmatmul.f32.gmra.mxu0 %v65
  %v1192 = vpop.f32.mrf.mxu0
  %v1193 = vadd.f32 0.0, %v1192
  %1194 = vmatmul.f32.gmra.mxu0 %v68
  %v1195 = vpop.f32.mrf.mxu0
  %v1196 = vadd.f32 0.0, %v1195
  %1197 = vmatmul.f32.gmra.mxu0 %v71
  %v1198 = vpop.f32.mrf.mxu0
  %v1199 = vadd.f32 0.0, %v1198
  %1200 = vmatmul.f32.gmra.mxu0 %v74
  %v1201 = vpop.f32.mrf.mxu0
  %v1202 = vadd.f32 0.0, %v1201
  %1203 = vmatmul.f32.gmra.mxu0 %v77
  %v1204 = vpop.f32.mrf.mxu0
  %v1205 = vadd.f32 0.0, %v1204
  %1206 = vmatmul.f32.gmra.mxu0 %v80
  %v1207 = vpop.f32.mrf.mxu0
  %v1208 = vadd.f32 0.0, %v1207
  %1209 = vmatmul.f32.gmra.mxu0 %v83
  %v1210 = vpop.f32.mrf.mxu0
  %v1211 = vadd.f32 0.0, %v1210
  %1212 = vmatmul.f32.gmra.mxu0 %v86
  %v1213 = vpop.f32.mrf.mxu0
  %v1214 = vadd.f32 0.0, %v1213
  %1215 = vmatmul.f32.gmra.mxu0 %v89
  %v1216 = vpop.f32.mrf.mxu0
  %v1217 = vadd.f32 0.0, %v1216
  %1218 = vmatmul.f32.gmra.mxu0 %v92
  %v1219 = vpop.f32.mrf.mxu0
  %v1220 = vadd.f32 0.0, %v1219
  %1221 = vmatmul.f32.gmra.mxu0 %v95
  %v1222 = vpop.f32.mrf.mxu0
  %v1223 = vadd.f32 0.0, %v1222
  %1224 = vmatmul.f32.gmra.mxu0 %v98
  %v1225 = vpop.f32.mrf.mxu0
  %v1226 = vadd.f32 0.0, %v1225
  %1227 = vmatmul.f32.gmra.mxu0 %v101
  %v1228 = vpop.f32.mrf.mxu0
  %v1229 = vadd.f32 0.0, %v1228
  %1230 = vmatmul.f32.gmra.mxu0 %v104
  %v1231 = vpop.f32.mrf.mxu0
  %v1232 = vadd.f32 0.0, %v1231
  %1233 = vmatmul.f32.gmra.mxu0 %v107
  %v1234 = vpop.f32.mrf.mxu0
  %v1235 = vadd.f32 0.0, %v1234
  %1236 = vmatmul.f32.gmra.mxu0 %v110
  %v1237 = vpop.f32.mrf.mxu0
  %v1238 = vadd.f32 0.0, %v1237
  %1239 = vmatmul.f32.gmra.mxu0 %v113
  %v1240 = vpop.f32.mrf.mxu0
  %v1241 = vadd.f32 0.0, %v1240
  %1242 = vmatmul.f32.gmra.mxu0 %v116
  %v1243 = vpop.f32.mrf.mxu0
  %v1244 = vadd.f32 0.0, %v1243
  %1245 = vmatmul.f32.gmra.mxu0 %v119
  %v1246 = vpop.f32.mrf.mxu0
  %v1247 = vadd.f32 0.0, %v1246
  %1248 = vdwg.mxu0
  %v1249 = vadd.f32 %v1190, %v1226
  %v1250 = vadd.f32 %v1193, %v1229
  %v1251 = vadd.f32 %v1196, %v1232
  %v1252 = vadd.f32 %v1199, %v1235
  %v1253 = vadd.f32 %v1202, %v1238
  %v1254 = vadd.f32 %v1205, %v1241
  %v1255 = vadd.f32 %v1208, %v1244
  %v1256 = vadd.f32 %v1211, %v1247
  %v1257 = vadd.f32 %v1249, %v44
  %v1258 = vadd.f32 %v1250, %v45
  %v1259 = vadd.f32 %v1251, %v46
  %v1260 = vadd.f32 %v1252, %v47
  %v1261 = vadd.f32 %v1253, %v48
  %v1262 = vadd.f32 %v1254, %v49
  %v1263 = vadd.f32 %v1255, %v50
  %v1264 = vadd.f32 %v1256, %v51
  %v1265 = vxor.u32 %v1257, 2147483648
  %v1266 = vxor.u32 %v1258, 2147483648
  %v1267 = vxor.u32 %v1259, 2147483648
  %v1268 = vxor.u32 %v1260, 2147483648
  %v1269 = vxor.u32 %v1261, 2147483648
  %v1270 = vxor.u32 %v1262, 2147483648
  %v1271 = vxor.u32 %v1263, 2147483648
  %v1272 = vxor.u32 %v1264, 2147483648
  %v1273 = vmul.f32 %v1265, 1.442695
  %v1274 = vpow.pop %v1273
  %v1275 = vmul.f32 %v1266, 1.442695
  %v1276 = vpow.pop %v1275
  %v1277 = vmul.f32 %v1267, 1.442695
  %v1278 = vpow.pop %v1277
  %v1279 = vmul.f32 %v1268, 1.442695
  %v1280 = vpow.pop %v1279
  %v1281 = vmul.f32 %v1269, 1.442695
  %v1282 = vpow.pop %v1281
  %v1283 = vmul.f32 %v1270, 1.442695
  %v1284 = vpow.pop %v1283
  %v1285 = vmul.f32 %v1271, 1.442695
  %v1286 = vpow.pop %v1285
  %v1287 = vmul.f32 %v1272, 1.442695
  %v1288 = vpow.pop %v1287
  %v1289 = vadd.f32 %v1274, 1.0
  %v1290 = vadd.f32 %v1276, 1.0
  %v1291 = vadd.f32 %v1278, 1.0
  %v1292 = vadd.f32 %v1280, 1.0
  %v1293 = vadd.f32 %v1282, 1.0
  %v1294 = vadd.f32 %v1284, 1.0
  %v1295 = vadd.f32 %v1286, 1.0
  %v1296 = vadd.f32 %v1288, 1.0
  %v1297 = vrcp.pop %v1289
  %v1298 = vmul.f32 %v1289, %v1297
  %v1299 = vsub.f32 1.0, %v1298
  %v1300 = vmul.f32 %v1297, %v1299
  %v1301 = vadd.f32 %v1297, %v1300
  %vm1302 = vweird.f32 %v1289
  %vm1303 = vweird.f32 %v1297
  %vm1304 = vmor %vm1302, %vm1303
  %v1305 = vsel %vm1304, %v1297, %v1301
  %v1306 = vand.u32 2147483647, %v1289
  %vm1307 = vcmp.eq.f32.partialorder %v1306, 8.507059e+37
  %v1308 = vand.u32 %v1289, 2147483648
  %v1309 = vor.u32 1.1754944e-38, %v1308
  %v1310 = vsel %vm1307, %v1309, %v1305
  %v1311 = vmul.f32 1.0, %v1310
  %v1312 = vrcp.pop %v1290
  %v1313 = vmul.f32 %v1290, %v1312
  %v1314 = vsub.f32 1.0, %v1313
  %v1315 = vmul.f32 %v1312, %v1314
  %v1316 = vadd.f32 %v1312, %v1315
  %vm1317 = vweird.f32 %v1290
  %vm1318 = vweird.f32 %v1312
  %vm1319 = vmor %vm1317, %vm1318
  %v1320 = vsel %vm1319, %v1312, %v1316
  %v1321 = vand.u32 2147483647, %v1290
  %vm1322 = vcmp.eq.f32.partialorder %v1321, 8.507059e+37
  %v1323 = vand.u32 %v1290, 2147483648
  %v1324 = vor.u32 1.1754944e-38, %v1323
  %v1325 = vsel %vm1322, %v1324, %v1320
  %v1326 = vmul.f32 1.0, %v1325
  %v1327 = vrcp.pop %v1291
  %v1328 = vmul.f32 %v1291, %v1327
  %v1329 = vsub.f32 1.0, %v1328
  %v1330 = vmul.f32 %v1327, %v1329
  %v1331 = vadd.f32 %v1327, %v1330
  %vm1332 = vweird.f32 %v1291
  %vm1333 = vweird.f32 %v1327
  %vm1334 = vmor %vm1332, %vm1333
  %v1335 = vsel %vm1334, %v1327, %v1331
  %v1336 = vand.u32 2147483647, %v1291
  %vm1337 = vcmp.eq.f32.partialorder %v1336, 8.507059e+37
  %v1338 = vand.u32 %v1291, 2147483648
  %v1339 = vor.u32 1.1754944e-38, %v1338
  %v1340 = vsel %vm1337, %v1339, %v1335
  %v1341 = vmul.f32 1.0, %v1340
  %v1342 = vrcp.pop %v1292
  %v1343 = vmul.f32 %v1292, %v1342
  %v1344 = vsub.f32 1.0, %v1343
  %v1345 = vmul.f32 %v1342, %v1344
  %v1346 = vadd.f32 %v1342, %v1345
  %vm1347 = vweird.f32 %v1292
  %vm1348 = vweird.f32 %v1342
  %vm1349 = vmor %vm1347, %vm1348
  %v1350 = vsel %vm1349, %v1342, %v1346
  %v1351 = vand.u32 2147483647, %v1292
  %vm1352 = vcmp.eq.f32.partialorder %v1351, 8.507059e+37
  %v1353 = vand.u32 %v1292, 2147483648
  %v1354 = vor.u32 1.1754944e-38, %v1353
  %v1355 = vsel %vm1352, %v1354, %v1350
  %v1356 = vmul.f32 1.0, %v1355
  %v1357 = vrcp.pop %v1293
  %v1358 = vmul.f32 %v1293, %v1357
  %v1359 = vsub.f32 1.0, %v1358
  %v1360 = vmul.f32 %v1357, %v1359
  %v1361 = vadd.f32 %v1357, %v1360
  %vm1362 = vweird.f32 %v1293
  %vm1363 = vweird.f32 %v1357
  %vm1364 = vmor %vm1362, %vm1363
  %v1365 = vsel %vm1364, %v1357, %v1361
  %v1366 = vand.u32 2147483647, %v1293
  %vm1367 = vcmp.eq.f32.partialorder %v1366, 8.507059e+37
  %v1368 = vand.u32 %v1293, 2147483648
  %v1369 = vor.u32 1.1754944e-38, %v1368
  %v1370 = vsel %vm1367, %v1369, %v1365
  %v1371 = vmul.f32 1.0, %v1370
  %v1372 = vrcp.pop %v1294
  %v1373 = vmul.f32 %v1294, %v1372
  %v1374 = vsub.f32 1.0, %v1373
  %v1375 = vmul.f32 %v1372, %v1374
  %v1376 = vadd.f32 %v1372, %v1375
  %vm1377 = vweird.f32 %v1294
  %vm1378 = vweird.f32 %v1372
  %vm1379 = vmor %vm1377, %vm1378
  %v1380 = vsel %vm1379, %v1372, %v1376
  %v1381 = vand.u32 2147483647, %v1294
  %vm1382 = vcmp.eq.f32.partialorder %v1381, 8.507059e+37
  %v1383 = vand.u32 %v1294, 2147483648
  %v1384 = vor.u32 1.1754944e-38, %v1383
  %v1385 = vsel %vm1382, %v1384, %v1380
  %v1386 = vmul.f32 1.0, %v1385
  %v1387 = vrcp.pop %v1295
  %v1388 = vmul.f32 %v1295, %v1387
  %v1389 = vsub.f32 1.0, %v1388
  %v1390 = vmul.f32 %v1387, %v1389
  %v1391 = vadd.f32 %v1387, %v1390
  %vm1392 = vweird.f32 %v1295
  %vm1393 = vweird.f32 %v1387
  %vm1394 = vmor %vm1392, %vm1393
  %v1395 = vsel %vm1394, %v1387, %v1391
  %v1396 = vand.u32 2147483647, %v1295
  %vm1397 = vcmp.eq.f32.partialorder %v1396, 8.507059e+37
  %v1398 = vand.u32 %v1295, 2147483648
  %v1399 = vor.u32 1.1754944e-38, %v1398
  %v1400 = vsel %vm1397, %v1399, %v1395
  %v1401 = vmul.f32 1.0, %v1400
  %v1402 = vrcp.pop %v1296
  %v1403 = vmul.f32 %v1296, %v1402
  %v1404 = vsub.f32 1.0, %v1403
  %v1405 = vmul.f32 %v1402, %v1404
  %v1406 = vadd.f32 %v1402, %v1405
  %vm1407 = vweird.f32 %v1296
  %vm1408 = vweird.f32 %v1402
  %vm1409 = vmor %vm1407, %vm1408
  %v1410 = vsel %vm1409, %v1402, %v1406
  %v1411 = vand.u32 2147483647, %v1296
  %vm1412 = vcmp.eq.f32.partialorder %v1411, 8.507059e+37
  %v1413 = vand.u32 %v1296, 2147483648
  %v1414 = vor.u32 1.1754944e-38, %v1413
  %v1415 = vsel %vm1412, %v1414, %v1410
  %v1416 = vmul.f32 1.0, %v1415
  %v1417 = vmul.f32 %v1371, %v1127
  %v1418 = vmul.f32 %v1386, %v1128
  %v1419 = vmul.f32 %v1401, %v1129
  %v1420 = vmul.f32 %v1416, %v1130
  %1421 = vmatpush.msra.mxu0 0.0
  %1422 = vmatpush.msra.mxu0 0.0
  %1423 = vmatpush.msra.mxu0 0.0
  %1424 = vmatpush.msra.mxu0 0.0
  %1425 = vmatpush.msra.mxu0 0.0
  %1426 = vmatpush.msra.mxu0 0.0
  %1427 = vmatpush.msra.mxu0 0.0
  %1428 = vmatpush.msra.mxu0 0.0
  %1429 = vmatpush.msra.mxu0 0.0
  %1430 = vmatpush.msra.mxu0 0.0
  %1431 = vmatpush.msra.mxu0 0.0
  %1432 = vmatpush.msra.mxu0 0.0
  %1433 = vmatpush.msra.mxu0 %v1420
  %1434 = vmatpush.msra.mxu0 %v1419
  %1435 = vmatpush.msra.mxu0 %v1418
  %1436 = vmatpush.msra.mxu0 %v1417
  %1437 = vmatmul.f32.gmra.mxu0 %v371
  %v1438 = vpop.f32.mrf.mxu0
  %v1439 = vadd.f32 0.0, %v1438
  %1440 = vmatmul.f32.gmra.mxu0 %v374
  %v1441 = vpop.f32.mrf.mxu0
  %v1442 = vadd.f32 0.0, %v1441
  %1443 = vmatmul.f32.gmra.mxu0 %v377
  %v1444 = vpop.f32.mrf.mxu0
  %v1445 = vadd.f32 0.0, %v1444
  %1446 = vmatmul.f32.gmra.mxu0 %v380
  %v1447 = vpop.f32.mrf.mxu0
  %v1448 = vadd.f32 0.0, %v1447
  %1449 = vdwg.mxu0
  %v1450 = vadd.f32 %v1214, %v1439
  %v1451 = vadd.f32 %v1217, %v1442
  %v1452 = vadd.f32 %v1220, %v1445
  %v1453 = vadd.f32 %v1223, %v1448
  %v1454 = vadd.f32 %v1450, %v52
  %v1455 = vadd.f32 %v1451, %v53
  %v1456 = vadd.f32 %v1452, %v54
  %v1457 = vadd.f32 %v1453, %v55
  %v1458 = vtanh.pop %v1454
  %v1459 = vtanh.pop %v1455
  %v1460 = vtanh.pop %v1456
  %v1461 = vtanh.pop %v1457
  %v1462 = vsub.f32 1.0, %v1311
  %v1463 = vsub.f32 1.0, %v1326
  %v1464 = vsub.f32 1.0, %v1341
  %v1465 = vsub.f32 1.0, %v1356
  %v1466 = vmul.f32 %v1462, %v1127
  %v1467 = vmul.f32 %v1463, %v1128
  %v1468 = vmul.f32 %v1464, %v1129
  %v1469 = vmul.f32 %v1465, %v1130
  %v1470 = vmul.f32 %v1311, %v1458
  %v1471 = vmul.f32 %v1326, %v1459
  %v1472 = vmul.f32 %v1341, %v1460
  %v1473 = vmul.f32 %v1356, %v1461
  %v1474 = vadd.f32 %v1466, %v1470
  %v1475 = vadd.f32 %v1467, %v1471
  %v1476 = vadd.f32 %v1468, %v1472
  %v1477 = vadd.f32 %v1469, %v1473
  %s1478 = scalar_lea.vmem %s0, 48
  %v1479 = vld [vmem:[%s1478] sm:$0xff]
  %v1480 = vld [vmem:[%s1478 + $0x8] sm:$0xff]
  %v1482 = vsel %vm60, %v1479, 0
  %v1485 = vsel %vm60, %v1480, 0
  %1487 = vmatpush.msra.mxu0 0.0
  %1488 = vmatpush.msra.mxu0 0.0
  %1489 = vmatpush.msra.mxu0 0.0
  %1490 = vmatpush.msra.mxu0 0.0
  %1491 = vmatpush.msra.mxu0 0.0
  %1492 = vmatpush.msra.mxu0 0.0
  %1493 = vmatpush.msra.mxu0 0.0
  %1494 = vmatpush.msra.mxu0 0.0
  %1495 = vmatpush.msra.mxu0 0.0
  %1496 = vmatpush.msra.mxu0 0.0
  %1497 = vmatpush.msra.mxu0 0.0
  %1498 = vmatpush.msra.mxu0 0.0
  %1499 = vmatpush.msra.mxu0 %v1477
  %1500 = vmatpush.msra.mxu0 %v1476
  %1501 = vmatpush.msra.mxu0 %v1475
  %1502 = vmatpush.msra.mxu0 %v1474
  %1503 = vmatmul.f32.gmra.mxu0 %v1482
  %v1504 = vpop.f32.mrf.mxu0
  %v1505 = vadd.f32 0.0, %v1504
  %1506 = vmatmul.f32.gmra.mxu0 %v1485
  %v1507 = vpop.f32.mrf.mxu0
  %v1508 = vadd.f32 0.0, %v1507
  %1509 = vdwg.mxu0
  %vm1510 = vcmp.ge.f32.partialorder %v1505, 0.0
  %vm1511 = vcmp.ge.f32.partialorder %v1508, 0.0
  %v1512 = vmul.f32 %v1505, 0.22916667
  %v1513 = vmul.f32 %v1508, 0.22916667
  %v1514 = vsel %vm1510, %v1505, %v1512
  %v1515 = vsel %vm1511, %v1508, %v1513
  %s1516 = scalar_lea.vmem %s5, 48
  %1517 = vst.msk [vmem:[%s1516] sm:$0xff] %vm60, %v1514
  %1518 = vst.msk [vmem:[%s1516 + $0x8] sm:$0xff] %vm60, %v1515
  // Predicated region
  $region22: #{evolve_gcno_forward.1} parent=0 // pred_check
    _
  $region23: #{evolve_gcno_forward.1} parent=0 // pred_check_branch
    %1520 = sbr.rel (0) target = $region25
  $region24: #{evolve_gcno_forward.1} parent=0 // pred_region
    _
  $region25: #{evolve_gcno_forward.1} parent=0 // pred_fallthru
    _
  // Predicated region
  $region26: #{evolve_gcno_forward.1} parent=0 // pred_check
    _
  $region27: #{evolve_gcno_forward.1} parent=0 // pred_check_branch
    %1522 = sbr.rel (0) target = $region29
  $region28: #{evolve_gcno_forward.1} parent=0 // pred_region
    _
  $region29: #{evolve_gcno_forward.1} parent=0 // pred_fallthru
    _

</llo_original>
